<compile_context>
chip_gen: v7x
topology: tpu7x:2x2x1
jax: 0.10.0
libtpu: 0.0.40
codegen_flags: <defaults>
</compile_context>

<pallas_src>
import jax
import jax.numpy as jnp
from jax.experimental import pallas as pl
from jax.experimental.pallas import tpu as pltpu

# ----------------------------- config ---------------------------------------
VOCAB_SIZE = 64
V_PAD      = 128     # vocab axis padded to a full lane width (lane-dense compares / K=128)
EMB_DIM    = 128     # lane-aligned
MAX_HOPS   = 3
BATCH      = 8
MEM_SIZE   = 8
SENT_LEN   = 6
QUERY_LEN  = 6
NUM_CAND   = 16
CAND_LEN   = 4
C_PAD      = 128     # candidate axis padded to a full lane width (dense store)

TOK_LEN    = max(SENT_LEN, QUERY_LEN)        # stories/queries share one id matrix
N_ROWS     = BATCH * MEM_SIZE + BATCH        # 72 rows (multiple of 8 -> sublane aligned)


# ----------------------------- Pallas kernel --------------------------------
def memn2n_kernel(ids_ref, cand_t_ref, a_ref, w_t_ref, h_t_ref, logits_ref):
    """Fused MemN2N forward.

    ids_ref:     (N_ROWS, TOK_LEN)   i32   stacked story + query token ids
    cand_t_ref:  (CAND_LEN, C_PAD)   i32   candidate token ids (transposed, padded)
    a_ref:       (V_PAD, E)          bf16  embedding A (row 0 zeroed, vocab-padded)
    w_t_ref:     (E, V_PAD)          bf16  embedding W, pre-transposed, vocab-padded
    h_t_ref:     (E, E)              bf16  H.weight.T (so u_new = u @ H_T)
    logits_ref:  (B, C_PAD)          f32   output (pad sliced off outside)
    """
    # ---- fused BOW embedding for stories AND queries in one matmul ----
    # BOW with emb_sum=True equals `counts @ embedding_table`: the embedding
    # gather + token sum becomes one MXU matmul.  Token id 0 (padding_idx)
    # hits the zeroed table row, so padding contributes nothing.
    ids = ids_ref[...]                                              # (N_ROWS, TOK_LEN)
    iota_v = jax.lax.broadcasted_iota(jnp.int32, (N_ROWS, V_PAD), 1)
    cnt = jnp.zeros((N_ROWS, V_PAD), jnp.int32)
    for s in range(TOK_LEN):                                        # static unroll
        cnt = cnt + (ids[:, s:s + 1] == iota_v).astype(jnp.int32)
    # counts are exact small ints -> bf16 is lossless; bf16 x bf16 MXU, f32 acc
    mu = jnp.dot(cnt.astype(jnp.bfloat16), a_ref[...],
                 preferred_element_type=jnp.float32)                # (N_ROWS, E)
    m = mu[:BATCH * MEM_SIZE].reshape(BATCH, MEM_SIZE, EMB_DIM)     # (B, MEM, E)
    u = mu[BATCH * MEM_SIZE:BATCH * MEM_SIZE + BATCH]               # (B, E) = u_0

    # Candidate reps built directly transposed (E, C_PAD) so the final logits
    # matmul is a plain (B,E)@(E,C) contraction.
    c_ids_t = cand_t_ref[...]                                       # (CL, C_PAD)
    iota_vc = jax.lax.broadcasted_iota(jnp.int32, (V_PAD, C_PAD), 0)
    cnt_c_t = jnp.zeros((V_PAD, C_PAD), jnp.int32)
    for s in range(CAND_LEN):                                       # static unroll
        cnt_c_t = cnt_c_t + (c_ids_t[s:s + 1, :] == iota_vc).astype(jnp.int32)
    cand_rep_t = jnp.dot(w_t_ref[...], cnt_c_t.astype(jnp.bfloat16),
                         preferred_element_type=jnp.float32)        # (E, C_PAD)
    cand_rep_t_bf = cand_rep_t.astype(jnp.bfloat16)

    h_t = h_t_ref[...]                                              # (E, E) bf16

    # ---- memory hops (dot-product attention) ----
    # Elementwise math stays f32 (v5e VPU/EUP have no bf16); only MXU operands
    # are bf16.  Scores / context stay on the VPU — MXU would be underfilled.
    for _ in range(MAX_HOPS):                                       # static unroll
        # scores[b, i] = sum_e m[b,i,e] * u[b,e]
        scores = jnp.sum(m * u[:, None, :], axis=-1)                # (B, MEM)
        scores = scores - jnp.max(scores, axis=-1, keepdims=True)
        e = jnp.exp(scores)
        p = e * pl.reciprocal(jnp.sum(e, axis=-1, keepdims=True), approx=True)
        # context: o[b, e] = sum_i p[b,i] * m[b,i,e]
        o = jnp.sum(p[:, :, None] * m, axis=1)                      # (B, E)
        # u_{k+1} = tanh(u_k @ H^T + o); bf16 MXU operands, f32 accumulate
        uh = jnp.dot(u.astype(jnp.bfloat16), h_t,
                     preferred_element_type=jnp.float32)
        u = jnp.tanh(uh + o)

    # logits = u @ candidates_rep^T — lane-dense (B, 128) store
    logits_ref[...] = jnp.dot(u.astype(jnp.bfloat16), cand_rep_t_bf,
                              preferred_element_type=jnp.float32)


def memn2n_pallas(ids, cand_t, a, w_t, h_t):
    flops = (
        2 * N_ROWS * V_PAD * EMB_DIM                                # m + u_0 (one matmul)
        + 2 * EMB_DIM * V_PAD * C_PAD                               # cand_rep
        + MAX_HOPS * (4 * BATCH * MEM_SIZE * EMB_DIM                # scores + o
                      + 2 * BATCH * EMB_DIM * EMB_DIM)              # u @ H^T
        + 2 * BATCH * EMB_DIM * C_PAD                               # logits
    )
    transcendentals = MAX_HOPS * (BATCH * MEM_SIZE + BATCH * EMB_DIM + BATCH)
    bytes_accessed = (
        4 * (ids.size + cand_t.size)                                # int32 ids
        + 2 * (a.size + w_t.size + h_t.size)                        # bf16 tables
        + 4 * BATCH * C_PAD                                         # f32 logits
    )
    vmem = pl.BlockSpec(memory_space=pltpu.MemorySpace.VMEM)
    return pl.pallas_call(
        memn2n_kernel,
        out_shape=jax.ShapeDtypeStruct((BATCH, C_PAD), jnp.float32),
        in_specs=[vmem] * 5,
        out_specs=vmem,
        cost_estimate=pl.CostEstimate(flops=flops,
                                      transcendentals=transcendentals,
                                      bytes_accessed=bytes_accessed),
    )(ids, cand_t, a, w_t, h_t)


# ----------------------------- JAX wrapper -----------------------------------
@jax.jit
def memn2n_forward(stories, queries, candidates, A, W, H_w):
    # Stack story sentences and queries into one id matrix so the kernel builds
    # m and u_0 with a single counts@A matmul.
    stories2d = stories.reshape(BATCH * MEM_SIZE, SENT_LEN)
    if SENT_LEN < TOK_LEN:
        stories2d = jnp.pad(stories2d, ((0, 0), (0, TOK_LEN - SENT_LEN)))
    q2d = queries
    if QUERY_LEN < TOK_LEN:
        q2d = jnp.pad(q2d, ((0, 0), (0, TOK_LEN - QUERY_LEN)))
    ids = jnp.concatenate([stories2d, q2d], axis=0)                 # (N_ROWS, TOK_LEN)

    # Pad candidate axis to 128 with token id 0 (zero embedding row) so the
    # logits store is lane-dense; slice the pad off afterwards.
    cand_pad = jnp.zeros((C_PAD, CAND_LEN), jnp.int32).at[:NUM_CAND].set(candidates)

    # Vocab-padded, bf16 embedding tables (zero rows/cols in the pad region).
    a_pad = (jnp.zeros((V_PAD, EMB_DIM), jnp.float32)
             .at[:VOCAB_SIZE].set(A)).astype(jnp.bfloat16)          # (V_PAD, E)
    w_t_pad = (jnp.zeros((EMB_DIM, V_PAD), jnp.float32)
               .at[:, :VOCAB_SIZE].set(W.T)).astype(jnp.bfloat16)   # (E, V_PAD)

    logits_pad = memn2n_pallas(
        ids, cand_pad.T, a_pad, w_t_pad,
        H_w.T.astype(jnp.bfloat16),         # (E_in, E_out) bf16, pre-transposed
    )
    return logits_pad[:, :NUM_CAND]


@jax.jit
def memn2n_forward_ref(stories, queries, candidates, A, W, H_w):
    """Pure-JAX f32 reference for correctness checking."""
    m = jnp.sum(A[stories], axis=2)
    u = jnp.sum(A[queries], axis=1)
    cand_rep = jnp.sum(W[candidates], axis=1)
    for _ in range(MAX_HOPS):
        scores = jnp.einsum('bme,be->bm', m, u)
        p = jax.nn.softmax(scores, axis=-1)
        o = jnp.einsum('bm,bme->be', p, m)
        u = jnp.tanh(u @ H_w.T + o)
    return u @ cand_rep.T


# ----------------------------- main ------------------------------------------
if __name__ == "__main__":
    key = jax.random.PRNGKey(0)
    k_a, k_w, k_h, k_s, k_q, k_c = jax.random.split(key, 6)

    # deterministic parameter init (synthetic, no checkpoint load)
    # TODO(synk): load_checkpoints (pickle I/O) has no in-kernel equivalent.
    A = 0.1 * jax.random.normal(k_a, (VOCAB_SIZE, EMB_DIM), jnp.float32)
    W = 0.1 * jax.random.normal(k_w, (VOCAB_SIZE, EMB_DIM), jnp.float32)
    A = A.at[0].set(0.0)   # padding_idx=0 -> zero row
    W = W.at[0].set(0.0)
    H_w = 0.1 * jax.random.normal(k_h, (EMB_DIM, EMB_DIM), jnp.float32)

    # token inputs (ids in [0, vocab); 0 acts as padding)
    stories = jax.random.randint(k_s, (BATCH, MEM_SIZE, SENT_LEN), 0, VOCAB_SIZE, jnp.int32)
    queries = jax.random.randint(k_q, (BATCH, QUERY_LEN), 0, VOCAB_SIZE, jnp.int32)
    candidates = jax.random.randint(k_c, (NUM_CAND, CAND_LEN), 0, VOCAB_SIZE, jnp.int32)

    logits = memn2n_forward(stories, queries, candidates, A, W, H_w)
    jax.block_until_ready(logits)

    ref = memn2n_forward_ref(stories, queries, candidates, A, W, H_w)
    jax.block_until_ready(ref)
    assert logits.shape == (BATCH, NUM_CAND)
    # bf16 tables + bf16 MXU operands + approx reciprocal in softmax -> looser
    # tolerance vs the pure-f32 reference (documented: probabilities don't sum
    # to exactly 1, logits carry ~1% relative error).
    assert jnp.allclose(logits, ref, atol=7.5e-2, rtol=7.5e-2), "mismatch vs JAX reference"

    print("KERNEL_OK")
</pallas_src>

<mosaic_0001>
module attributes {stable_mosaic.version = 11 : i64} {
  func.func @memn2n_kernel(%arg0: memref<72x6xi32, #tpu.memory_space<vmem>>, %arg1: memref<4x128xi32, #tpu.memory_space<vmem>>, %arg2: memref<128x128xbf16, #tpu.memory_space<vmem>>, %arg3: memref<128x128xbf16, #tpu.memory_space<vmem>>, %arg4: memref<128x128xbf16, #tpu.memory_space<vmem>>, %arg5: memref<8x128xf32, #tpu.memory_space<vmem>>) attributes {dimension_semantics = [], scalar_prefetch = 0 : i64, scratch_operands = 0 : i64, tpu.core_type = #tpu.core_type<tc>} {
    %c0 = arith.constant 0 : index
    %c0_0 = arith.constant 0 : index
    %0 = vector.load %arg0[%c0, %c0_0] : memref<72x6xi32, #tpu.memory_space<vmem>>, vector<72x6xi32>
    %1 = tpu.iota {dimensions = array<i32: 1>} : vector<72x128xi32>
    %c0_i32 = arith.constant 0 : i32
    %2 = vector.broadcast %c0_i32 : i32 to vector<72x128xi32>
    %3 = vector.extract_strided_slice %0 {offsets = [0, 0], sizes = [72, 1], strides = [1, 1]} : vector<72x6xi32> to vector<72x1xi32>
    %4 = vector.broadcast %3 : vector<72x1xi32> to vector<72x128xi32>
    %5 = arith.cmpi eq, %4, %1 : vector<72x128xi32>
    %6 = arith.extui %5 : vector<72x128xi1> to vector<72x128xi32>
    %7 = arith.addi %2, %6 : vector<72x128xi32>
    %8 = vector.extract_strided_slice %0 {offsets = [0, 1], sizes = [72, 1], strides = [1, 1]} : vector<72x6xi32> to vector<72x1xi32>
    %9 = vector.broadcast %8 : vector<72x1xi32> to vector<72x128xi32>
    %10 = arith.cmpi eq, %9, %1 : vector<72x128xi32>
    %11 = arith.extui %10 : vector<72x128xi1> to vector<72x128xi32>
    %12 = arith.addi %7, %11 : vector<72x128xi32>
    %13 = vector.extract_strided_slice %0 {offsets = [0, 2], sizes = [72, 1], strides = [1, 1]} : vector<72x6xi32> to vector<72x1xi32>
    %14 = vector.broadcast %13 : vector<72x1xi32> to vector<72x128xi32>
    %15 = arith.cmpi eq, %14, %1 : vector<72x128xi32>
    %16 = arith.extui %15 : vector<72x128xi1> to vector<72x128xi32>
    %17 = arith.addi %12, %16 : vector<72x128xi32>
    %18 = vector.extract_strided_slice %0 {offsets = [0, 3], sizes = [72, 1], strides = [1, 1]} : vector<72x6xi32> to vector<72x1xi32>
    %19 = vector.broadcast %18 : vector<72x1xi32> to vector<72x128xi32>
    %20 = arith.cmpi eq, %19, %1 : vector<72x128xi32>
    %21 = arith.extui %20 : vector<72x128xi1> to vector<72x128xi32>
    %22 = arith.addi %17, %21 : vector<72x128xi32>
    %23 = vector.extract_strided_slice %0 {offsets = [0, 4], sizes = [72, 1], strides = [1, 1]} : vector<72x6xi32> to vector<72x1xi32>
    %24 = vector.broadcast %23 : vector<72x1xi32> to vector<72x128xi32>
    %25 = arith.cmpi eq, %24, %1 : vector<72x128xi32>
    %26 = arith.extui %25 : vector<72x128xi1> to vector<72x128xi32>
    %27 = arith.addi %22, %26 : vector<72x128xi32>
    %28 = vector.extract_strided_slice %0 {offsets = [0, 5], sizes = [72, 1], strides = [1, 1]} : vector<72x6xi32> to vector<72x1xi32>
    %29 = vector.broadcast %28 : vector<72x1xi32> to vector<72x128xi32>
    %30 = arith.cmpi eq, %29, %1 : vector<72x128xi32>
    %31 = arith.extui %30 : vector<72x128xi1> to vector<72x128xi32>
    %32 = arith.addi %27, %31 : vector<72x128xi32>
    %33 = arith.sitofp %32 : vector<72x128xi32> to vector<72x128xbf16>
    %c0_1 = arith.constant 0 : index
    %c0_2 = arith.constant 0 : index
    %34 = vector.load %arg2[%c0_1, %c0_2] : memref<128x128xbf16, #tpu.memory_space<vmem>>, vector<128x128xbf16>
    %cst = arith.constant dense<0.000000e+00> : vector<72x128xf32>
    %35 = tpu.matmul %33, %34, %cst {dimension_numbers = #tpu.dot_dimension_numbers<[1], [0], [0], [1], [0, 0, 1, 1], [], []>} : vector<72x128xbf16>, vector<128x128xbf16>, vector<72x128xf32> -> vector<72x128xf32>
    %36 = vector.extract_strided_slice %35 {offsets = [0, 0], sizes = [64, 128], strides = [1, 1]} : vector<72x128xf32> to vector<64x128xf32>
    %37 = vector.shape_cast %36 : vector<64x128xf32> to vector<8x8x128xf32>
    %38 = vector.extract_strided_slice %35 {offsets = [64, 0], sizes = [8, 128], strides = [1, 1]} : vector<72x128xf32> to vector<8x128xf32>
    %c0_3 = arith.constant 0 : index
    %c0_4 = arith.constant 0 : index
    %39 = vector.load %arg1[%c0_3, %c0_4] : memref<4x128xi32, #tpu.memory_space<vmem>>, vector<4x128xi32>
    %40 = tpu.iota {dimensions = array<i32: 0>} : vector<128x128xi32>
    %c0_i32_5 = arith.constant 0 : i32
    %41 = vector.broadcast %c0_i32_5 : i32 to vector<128x128xi32>
    %42 = vector.extract_strided_slice %39 {offsets = [0, 0], sizes = [1, 128], strides = [1, 1]} : vector<4x128xi32> to vector<1x128xi32>
    %43 = vector.broadcast %42 : vector<1x128xi32> to vector<128x128xi32>
    %44 = arith.cmpi eq, %43, %40 : vector<128x128xi32>
    %45 = arith.extui %44 : vector<128x128xi1> to vector<128x128xi32>
    %46 = arith.addi %41, %45 : vector<128x128xi32>
    %47 = vector.extract_strided_slice %39 {offsets = [1, 0], sizes = [1, 128], strides = [1, 1]} : vector<4x128xi32> to vector<1x128xi32>
    %48 = vector.broadcast %47 : vector<1x128xi32> to vector<128x128xi32>
    %49 = arith.cmpi eq, %48, %40 : vector<128x128xi32>
    %50 = arith.extui %49 : vector<128x128xi1> to vector<128x128xi32>
    %51 = arith.addi %46, %50 : vector<128x128xi32>
    %52 = vector.extract_strided_slice %39 {offsets = [2, 0], sizes = [1, 128], strides = [1, 1]} : vector<4x128xi32> to vector<1x128xi32>
    %53 = vector.broadcast %52 : vector<1x128xi32> to vector<128x128xi32>
    %54 = arith.cmpi eq, %53, %40 : vector<128x128xi32>
    %55 = arith.extui %54 : vector<128x128xi1> to vector<128x128xi32>
    %56 = arith.addi %51, %55 : vector<128x128xi32>
    %57 = vector.extract_strided_slice %39 {offsets = [3, 0], sizes = [1, 128], strides = [1, 1]} : vector<4x128xi32> to vector<1x128xi32>
    %58 = vector.broadcast %57 : vector<1x128xi32> to vector<128x128xi32>
    %59 = arith.cmpi eq, %58, %40 : vector<128x128xi32>
    %60 = arith.extui %59 : vector<128x128xi1> to vector<128x128xi32>
    %61 = arith.addi %56, %60 : vector<128x128xi32>
    %c0_6 = arith.constant 0 : index
    %c0_7 = arith.constant 0 : index
    %62 = vector.load %arg3[%c0_6, %c0_7] : memref<128x128xbf16, #tpu.memory_space<vmem>>, vector<128x128xbf16>
    %63 = arith.sitofp %61 : vector<128x128xi32> to vector<128x128xbf16>
    %cst_8 = arith.constant dense<0.000000e+00> : vector<128x128xf32>
    %64 = tpu.matmul %62, %63, %cst_8 {dimension_numbers = #tpu.dot_dimension_numbers<[1], [0], [0], [1], [0, 0, 1, 1], [], []>} : vector<128x128xbf16>, vector<128x128xbf16>, vector<128x128xf32> -> vector<128x128xf32>
    %65 = arith.truncf %64 : vector<128x128xf32> to vector<128x128xbf16>
    %c0_9 = arith.constant 0 : index
    %c0_10 = arith.constant 0 : index
    %66 = vector.load %arg4[%c0_9, %c0_10] : memref<128x128xbf16, #tpu.memory_space<vmem>>, vector<128x128xbf16>
    %67 = vector.shape_cast %38 : vector<8x128xf32> to vector<8x1x128xf32>
    %68 = vector.broadcast %67 : vector<8x1x128xf32> to vector<8x8x128xf32>
    %69 = arith.mulf %37, %68 : vector<8x8x128xf32>
    %cst_11 = arith.constant dense<0.000000e+00> : vector<8x8xf32>
    %70 = vector.multi_reduction <add>, %69, %cst_11 [2] : vector<8x8x128xf32> to vector<8x8xf32>
    %cst_12 = arith.constant dense<0xFF800000> : vector<8xf32>
    %71 = vector.multi_reduction <maximumf>, %70, %cst_12 [1] : vector<8x8xf32> to vector<8xf32>
    %72 = vector.shape_cast %71 : vector<8xf32> to vector<8x1xf32>
    %73 = vector.broadcast %72 : vector<8x1xf32> to vector<8x8xf32>
    %74 = arith.subf %70, %73 : vector<8x8xf32>
    %75 = math.exp %74 : vector<8x8xf32>
    %cst_13 = arith.constant dense<0.000000e+00> : vector<8xf32>
    %76 = vector.multi_reduction <add>, %75, %cst_13 [1] : vector<8x8xf32> to vector<8xf32>
    %77 = vector.shape_cast %76 : vector<8xf32> to vector<8x1xf32>
    %78 = tpu.reciprocal %77 {approx = true} : vector<8x1xf32> -> vector<8x1xf32>
    %79 = vector.broadcast %78 : vector<8x1xf32> to vector<8x8xf32>
    %80 = arith.mulf %75, %79 : vector<8x8xf32>
    %81 = vector.shape_cast %80 : vector<8x8xf32> to vector<8x8x1xf32>
    %82 = vector.broadcast %81 : vector<8x8x1xf32> to vector<8x8x128xf32>
    %83 = arith.mulf %82, %37 : vector<8x8x128xf32>
    %cst_14 = arith.constant dense<0.000000e+00> : vector<8x128xf32>
    %84 = vector.multi_reduction <add>, %83, %cst_14 [1] : vector<8x8x128xf32> to vector<8x128xf32>
    %85 = arith.truncf %38 : vector<8x128xf32> to vector<8x128xbf16>
    %cst_15 = arith.constant dense<0.000000e+00> : vector<8x128xf32>
    %86 = tpu.matmul %85, %66, %cst_15 {dimension_numbers = #tpu.dot_dimension_numbers<[1], [0], [0], [1], [0, 0, 1, 1], [], []>} : vector<8x128xbf16>, vector<128x128xbf16>, vector<8x128xf32> -> vector<8x128xf32>
    %87 = arith.addf %86, %84 : vector<8x128xf32>
    %88 = math.tanh %87 : vector<8x128xf32>
    %89 = vector.shape_cast %88 : vector<8x128xf32> to vector<8x1x128xf32>
    %90 = vector.broadcast %89 : vector<8x1x128xf32> to vector<8x8x128xf32>
    %91 = arith.mulf %37, %90 : vector<8x8x128xf32>
    %cst_16 = arith.constant dense<0.000000e+00> : vector<8x8xf32>
    %92 = vector.multi_reduction <add>, %91, %cst_16 [2] : vector<8x8x128xf32> to vector<8x8xf32>
    %cst_17 = arith.constant dense<0xFF800000> : vector<8xf32>
    %93 = vector.multi_reduction <maximumf>, %92, %cst_17 [1] : vector<8x8xf32> to vector<8xf32>
    %94 = vector.shape_cast %93 : vector<8xf32> to vector<8x1xf32>
    %95 = vector.broadcast %94 : vector<8x1xf32> to vector<8x8xf32>
    %96 = arith.subf %92, %95 : vector<8x8xf32>
    %97 = math.exp %96 : vector<8x8xf32>
    %cst_18 = arith.constant dense<0.000000e+00> : vector<8xf32>
    %98 = vector.multi_reduction <add>, %97, %cst_18 [1] : vector<8x8xf32> to vector<8xf32>
    %99 = vector.shape_cast %98 : vector<8xf32> to vector<8x1xf32>
    %100 = tpu.reciprocal %99 {approx = true} : vector<8x1xf32> -> vector<8x1xf32>
    %101 = vector.broadcast %100 : vector<8x1xf32> to vector<8x8xf32>
    %102 = arith.mulf %97, %101 : vector<8x8xf32>
    %103 = vector.shape_cast %102 : vector<8x8xf32> to vector<8x8x1xf32>
    %104 = vector.broadcast %103 : vector<8x8x1xf32> to vector<8x8x128xf32>
    %105 = arith.mulf %104, %37 : vector<8x8x128xf32>
    %cst_19 = arith.constant dense<0.000000e+00> : vector<8x128xf32>
    %106 = vector.multi_reduction <add>, %105, %cst_19 [1] : vector<8x8x128xf32> to vector<8x128xf32>
    %107 = arith.truncf %88 : vector<8x128xf32> to vector<8x128xbf16>
    %cst_20 = arith.constant dense<0.000000e+00> : vector<8x128xf32>
    %108 = tpu.matmul %107, %66, %cst_20 {dimension_numbers = #tpu.dot_dimension_numbers<[1], [0], [0], [1], [0, 0, 1, 1], [], []>} : vector<8x128xbf16>, vector<128x128xbf16>, vector<8x128xf32> -> vector<8x128xf32>
    %109 = arith.addf %108, %106 : vector<8x128xf32>
    %110 = math.tanh %109 : vector<8x128xf32>
    %111 = vector.shape_cast %110 : vector<8x128xf32> to vector<8x1x128xf32>
    %112 = vector.broadcast %111 : vector<8x1x128xf32> to vector<8x8x128xf32>
    %113 = arith.mulf %37, %112 : vector<8x8x128xf32>
    %cst_21 = arith.constant dense<0.000000e+00> : vector<8x8xf32>
    %114 = vector.multi_reduction <add>, %113, %cst_21 [2] : vector<8x8x128xf32> to vector<8x8xf32>
    %cst_22 = arith.constant dense<0xFF800000> : vector<8xf32>
    %115 = vector.multi_reduction <maximumf>, %114, %cst_22 [1] : vector<8x8xf32> to vector<8xf32>
    %116 = vector.shape_cast %115 : vector<8xf32> to vector<8x1xf32>
    %117 = vector.broadcast %116 : vector<8x1xf32> to vector<8x8xf32>
    %118 = arith.subf %114, %117 : vector<8x8xf32>
    %119 = math.exp %118 : vector<8x8xf32>
    %cst_23 = arith.constant dense<0.000000e+00> : vector<8xf32>
    %120 = vector.multi_reduction <add>, %119, %cst_23 [1] : vector<8x8xf32> to vector<8xf32>
    %121 = vector.shape_cast %120 : vector<8xf32> to vector<8x1xf32>
    %122 = tpu.reciprocal %121 {approx = true} : vector<8x1xf32> -> vector<8x1xf32>
    %123 = vector.broadcast %122 : vector<8x1xf32> to vector<8x8xf32>
    %124 = arith.mulf %119, %123 : vector<8x8xf32>
    %125 = vector.shape_cast %124 : vector<8x8xf32> to vector<8x8x1xf32>
    %126 = vector.broadcast %125 : vector<8x8x1xf32> to vector<8x8x128xf32>
    %127 = arith.mulf %126, %37 : vector<8x8x128xf32>
    %cst_24 = arith.constant dense<0.000000e+00> : vector<8x128xf32>
    %128 = vector.multi_reduction <add>, %127, %cst_24 [1] : vector<8x8x128xf32> to vector<8x128xf32>
    %129 = arith.truncf %110 : vector<8x128xf32> to vector<8x128xbf16>
    %cst_25 = arith.constant dense<0.000000e+00> : vector<8x128xf32>
    %130 = tpu.matmul %129, %66, %cst_25 {dimension_numbers = #tpu.dot_dimension_numbers<[1], [0], [0], [1], [0, 0, 1, 1], [], []>} : vector<8x128xbf16>, vector<128x128xbf16>, vector<8x128xf32> -> vector<8x128xf32>
    %131 = arith.addf %130, %128 : vector<8x128xf32>
    %132 = math.tanh %131 : vector<8x128xf32>
    %133 = arith.truncf %132 : vector<8x128xf32> to vector<8x128xbf16>
    %cst_26 = arith.constant dense<0.000000e+00> : vector<8x128xf32>
    %134 = tpu.matmul %133, %65, %cst_26 {dimension_numbers = #tpu.dot_dimension_numbers<[1], [0], [0], [1], [0, 0, 1, 1], [], []>} : vector<8x128xbf16>, vector<128x128xbf16>, vector<8x128xf32> -> vector<8x128xf32>
    %c0_27 = arith.constant 0 : index
    %c0_28 = arith.constant 0 : index
    %135 = vector.load %arg5[%c0_27, %c0_28] : memref<8x128xf32, #tpu.memory_space<vmem>>, vector<8x128xf32>
    tpu.vector_store %arg5[%c0_27, %c0_28], %134 {strides = array<i32>} : memref<8x128xf32, #tpu.memory_space<vmem>>, vector<8x128xf32>,
    return
  }
}

</mosaic_0001>

<llo_original>
// kernel: memn2n_forward.1
$region0: #{memn2n_forward.1}
  #allocation0 [shape = 'u32[]', space=smem, size = 0x4, offset = 0x4, fixed_abs, tag = 'smem constant byte address 0x4 - core index']
  #allocation1 [shape = 'u32[144,128]{1,0:T(1,128)}', space=vmem, size = 0x12000, scoped, tag = 'internal scratch']
  %s0 = inlined_call_operand.vmem [shape: s32[72,6], index: 0, kind: input, shape index: {}]
  %s1 = inlined_call_operand.vmem [shape: s32[4,128], index: 1, kind: input, shape index: {}]
  %s2 = inlined_call_operand.vmem [shape: bf16[128,128], index: 2, kind: input, shape index: {}]
  %s3 = inlined_call_operand.vmem [shape: bf16[128,128], index: 3, kind: input, shape index: {}]
  %s4 = inlined_call_operand.vmem [shape: bf16[128,128], index: 4, kind: input, shape index: {}]
  %s5 = inlined_call_operand.hbm [shape: f32[8,128], index: 5, kind: output, shape index: {}]
  %s6 = sld [smem:[#allocation0]]
  $region30: #{memn2n_forward.1} parent=0
    _
  %s8 = ssub.s32 1, %s6
  %s9 = scalar_select 0, %s8, %s6
  $region1: #{memn2n_forward.1} parent=0
    #allocation2 [shape = 'u8[4096]{0}', space=vmem, size = 0x1000, scoped, tag = 'output window, operand 0, single buffered']
    #allocation3 [shape = 's32[1]{0}', space=sflag, size = 0x4, scoped, tag = 'scoped memory for memn2n_forward.1']
    %10 = vsyncpa [#allocation3], 0
    // Predicated region
    $region2: #{memn2n_forward.1} parent=1 // pred_check
      _
    $region3: #{memn2n_forward.1} parent=1 // pred_check_branch
      %12 = sbr.rel (0) target = $region5
    $region4: #{memn2n_forward.1} parent=1 // pred_region
      _
    $region5: #{memn2n_forward.1} parent=1 // pred_fallthru
      _
    // Predicated region
    $region6: #{memn2n_forward.1} parent=1 // pred_check
      _
    $region7: #{memn2n_forward.1} parent=1 // pred_check_branch
      %14 = sbr.rel (0) target = $region9
    $region8: #{memn2n_forward.1} parent=1 // pred_region
      _
    $region9: #{memn2n_forward.1} parent=1 // pred_fallthru
      _
    // Predicated region
    $region10: #{memn2n_forward.1} parent=1 // pred_check
      _
    $region11: #{memn2n_forward.1} parent=1 // pred_check_branch
      %16 = sbr.rel (0) target = $region13
    $region12: #{memn2n_forward.1} parent=1 // pred_region
      _
    $region13: #{memn2n_forward.1} parent=1 // pred_fallthru
      _
    // Predicated region
    $region14: #{memn2n_forward.1} parent=1 // pred_check
      _
    $region15: #{memn2n_forward.1} parent=1 // pred_check_branch
      %18 = sbr.rel (0) target = $region17
    $region16: #{memn2n_forward.1} parent=1 // pred_region
      _
    $region17: #{memn2n_forward.1} parent=1 // pred_fallthru
      _
    // Predicated region
    $region18: #{memn2n_forward.1} parent=1 // pred_check
      _
    $region19: #{memn2n_forward.1} parent=1 // pred_check_branch
      %20 = sbr.rel (0) target = $region21
    $region20: #{memn2n_forward.1} parent=1 // pred_region
      _
    $region21: #{memn2n_forward.1} parent=1 // pred_fallthru
      _
    %v22 = vld [vmem:[%s0] sm:$0xff]
    %v23 = vld [vmem:[%s0 + $0x8] sm:$0xff]
    %v24 = vld [vmem:[%s0 + $0x10] sm:$0xff]
    %v25 = vld [vmem:[%s0 + $0x18] sm:$0xff]
    %v26 = vld [vmem:[%s0 + $0x20] sm:$0xff]
    %v27 = vld [vmem:[%s0 + $0x28] sm:$0xff]
    %v28 = vld [vmem:[%s0 + $0x30] sm:$0xff]
    %v29 = vld [vmem:[%s0 + $0x38] sm:$0xff]
    %v30 = vld [vmem:[%s0 + $0x40] sm:$0xff]
    %v31 = vlaneseq
    %v32 = vand.u32 %v31, 127
    %33 = vset.pattern.permute.xlu0 0
    %34 = vperm.xlu0 %33, %v22
    %v35 = vpop.permute.xlu0 %34
    %36 = vset.pattern.permute.xlu0 0
    %37 = vperm.xlu0 %36, %v23
    %v38 = vpop.permute.xlu0 %37
    %39 = vset.pattern.permute.xlu0 0
    %40 = vperm.xlu0 %39, %v24
    %v41 = vpop.permute.xlu0 %40
    %42 = vset.pattern.permute.xlu0 0
    %43 = vperm.xlu0 %42, %v25
    %v44 = vpop.permute.xlu0 %43
    %45 = vset.pattern.permute.xlu0 0
    %46 = vperm.xlu0 %45, %v26
    %v47 = vpop.permute.xlu0 %46
    %48 = vset.pattern.permute.xlu0 0
    %49 = vperm.xlu0 %48, %v27
    %v50 = vpop.permute.xlu0 %49
    %51 = vset.pattern.permute.xlu0 0
    %52 = vperm.xlu0 %51, %v28
    %v53 = vpop.permute.xlu0 %52
    %54 = vset.pattern.permute.xlu0 0
    %55 = vperm.xlu0 %54, %v29
    %v56 = vpop.permute.xlu0 %55
    %57 = vset.pattern.permute.xlu0 0
    %58 = vperm.xlu0 %57, %v30
    %v59 = vpop.permute.xlu0 %58
    %vm60 = vcmp.eq.s32.totalorder %v35, %v32
    %vm61 = vcmp.eq.s32.totalorder %v38, %v32
    %vm62 = vcmp.eq.s32.totalorder %v41, %v32
    %vm63 = vcmp.eq.s32.totalorder %v44, %v32
    %vm64 = vcmp.eq.s32.totalorder %v47, %v32
    %vm65 = vcmp.eq.s32.totalorder %v50, %v32
    %vm66 = vcmp.eq.s32.totalorder %v53, %v32
    %vm67 = vcmp.eq.s32.totalorder %v56, %v32
    %vm68 = vcmp.eq.s32.totalorder %v59, %v32
    %v69 = vsel %vm60, 1, 0
    %v70 = vsel %vm61, 1, 0
    %v71 = vsel %vm62, 1, 0
    %v72 = vsel %vm63, 1, 0
    %v73 = vsel %vm64, 1, 0
    %v74 = vsel %vm65, 1, 0
    %v75 = vsel %vm66, 1, 0
    %v76 = vsel %vm67, 1, 0
    %v77 = vsel %vm68, 1, 0
    %78 = vset.pattern.permute.xlu0 1
    %79 = vperm.xlu0 %78, %v22
    %v80 = vpop.permute.xlu0 %79
    %81 = vset.pattern.permute.xlu0 1
    %82 = vperm.xlu0 %81, %v23
    %v83 = vpop.permute.xlu0 %82
    %84 = vset.pattern.permute.xlu0 1
    %85 = vperm.xlu0 %84, %v24
    %v86 = vpop.permute.xlu0 %85
    %87 = vset.pattern.permute.xlu0 1
    %88 = vperm.xlu0 %87, %v25
    %v89 = vpop.permute.xlu0 %88
    %90 = vset.pattern.permute.xlu0 1
    %91 = vperm.xlu0 %90, %v26
    %v92 = vpop.permute.xlu0 %91
    %93 = vset.pattern.permute.xlu0 1
    %94 = vperm.xlu0 %93, %v27
    %v95 = vpop.permute.xlu0 %94
    %96 = vset.pattern.permute.xlu0 1
    %97 = vperm.xlu0 %96, %v28
    %v98 = vpop.permute.xlu0 %97
    %99 = vset.pattern.permute.xlu0 1
    %100 = vperm.xlu0 %99, %v29
    %v101 = vpop.permute.xlu0 %100
    %102 = vset.pattern.permute.xlu0 1
    %103 = vperm.xlu0 %102, %v30
    %v104 = vpop.permute.xlu0 %103
    %vm105 = vcmp.eq.s32.totalorder %v80, %v32
    %vm106 = vcmp.eq.s32.totalorder %v83, %v32
    %vm107 = vcmp.eq.s32.totalorder %v86, %v32
    %vm108 = vcmp.eq.s32.totalorder %v89, %v32
    %vm109 = vcmp.eq.s32.totalorder %v92, %v32
    %vm110 = vcmp.eq.s32.totalorder %v95, %v32
    %vm111 = vcmp.eq.s32.totalorder %v98, %v32
    %vm112 = vcmp.eq.s32.totalorder %v101, %v32
    %vm113 = vcmp.eq.s32.totalorder %v104, %v32
    %v114 = vsel %vm105, 1, 0
    %v115 = vsel %vm106, 1, 0
    %v116 = vsel %vm107, 1, 0
    %v117 = vsel %vm108, 1, 0
    %v118 = vsel %vm109, 1, 0
    %v119 = vsel %vm110, 1, 0
    %v120 = vsel %vm111, 1, 0
    %v121 = vsel %vm112, 1, 0
    %v122 = vsel %vm113, 1, 0
    %v123 = vadd.s32 %v69, %v114
    %v124 = vadd.s32 %v70, %v115
    %v125 = vadd.s32 %v71, %v116
    %v126 = vadd.s32 %v72, %v117
    %v127 = vadd.s32 %v73, %v118
    %v128 = vadd.s32 %v74, %v119
    %v129 = vadd.s32 %v75, %v120
    %v130 = vadd.s32 %v76, %v121
    %v131 = vadd.s32 %v77, %v122
    %132 = vset.pattern.permute.xlu0 2
    %133 = vperm.xlu0 %132, %v22
    %v134 = vpop.permute.xlu0 %133
    %135 = vset.pattern.permute.xlu0 2
    %136 = vperm.xlu0 %135, %v23
    %v137 = vpop.permute.xlu0 %136
    %138 = vset.pattern.permute.xlu0 2
    %139 = vperm.xlu0 %138, %v24
    %v140 = vpop.permute.xlu0 %139
    %141 = vset.pattern.permute.xlu0 2
    %142 = vperm.xlu0 %141, %v25
    %v143 = vpop.permute.xlu0 %142
    %144 = vset.pattern.permute.xlu0 2
    %145 = vperm.xlu0 %144, %v26
    %v146 = vpop.permute.xlu0 %145
    %147 = vset.pattern.permute.xlu0 2
    %148 = vperm.xlu0 %147, %v27
    %v149 = vpop.permute.xlu0 %148
    %150 = vset.pattern.permute.xlu0 2
    %151 = vperm.xlu0 %150, %v28
    %v152 = vpop.permute.xlu0 %151
    %153 = vset.pattern.permute.xlu0 2
    %154 = vperm.xlu0 %153, %v29
    %v155 = vpop.permute.xlu0 %154
    %156 = vset.pattern.permute.xlu0 2
    %157 = vperm.xlu0 %156, %v30
    %v158 = vpop.permute.xlu0 %157
    %vm159 = vcmp.eq.s32.totalorder %v134, %v32
    %vm160 = vcmp.eq.s32.totalorder %v137, %v32
    %vm161 = vcmp.eq.s32.totalorder %v140, %v32
    %vm162 = vcmp.eq.s32.totalorder %v143, %v32
    %vm163 = vcmp.eq.s32.totalorder %v146, %v32
    %vm164 = vcmp.eq.s32.totalorder %v149, %v32
    %vm165 = vcmp.eq.s32.totalorder %v152, %v32
    %vm166 = vcmp.eq.s32.totalorder %v155, %v32
    %vm167 = vcmp.eq.s32.totalorder %v158, %v32
    %v168 = vsel %vm159, 1, 0
    %v169 = vsel %vm160, 1, 0
    %v170 = vsel %vm161, 1, 0
    %v171 = vsel %vm162, 1, 0
    %v172 = vsel %vm163, 1, 0
    %v173 = vsel %vm164, 1, 0
    %v174 = vsel %vm165, 1, 0
    %v175 = vsel %vm166, 1, 0
    %v176 = vsel %vm167, 1, 0
    %v177 = vadd.s32 %v123, %v168
    %v178 = vadd.s32 %v124, %v169
    %v179 = vadd.s32 %v125, %v170
    %v180 = vadd.s32 %v126, %v171
    %v181 = vadd.s32 %v127, %v172
    %v182 = vadd.s32 %v128, %v173
    %v183 = vadd.s32 %v129, %v174
    %v184 = vadd.s32 %v130, %v175
    %v185 = vadd.s32 %v131, %v176
    %186 = vset.pattern.permute.xlu0 3
    %187 = vperm.xlu0 %186, %v22
    %v188 = vpop.permute.xlu0 %187
    %189 = vset.pattern.permute.xlu0 3
    %190 = vperm.xlu0 %189, %v23
    %v191 = vpop.permute.xlu0 %190
    %192 = vset.pattern.permute.xlu0 3
    %193 = vperm.xlu0 %192, %v24
    %v194 = vpop.permute.xlu0 %193
    %195 = vset.pattern.permute.xlu0 3
    %196 = vperm.xlu0 %195, %v25
    %v197 = vpop.permute.xlu0 %196
    %198 = vset.pattern.permute.xlu0 3
    %199 = vperm.xlu0 %198, %v26
    %v200 = vpop.permute.xlu0 %199
    %201 = vset.pattern.permute.xlu0 3
    %202 = vperm.xlu0 %201, %v27
    %v203 = vpop.permute.xlu0 %202
    %204 = vset.pattern.permute.xlu0 3
    %205 = vperm.xlu0 %204, %v28
    %v206 = vpop.permute.xlu0 %205
    %207 = vset.pattern.permute.xlu0 3
    %208 = vperm.xlu0 %207, %v29
    %v209 = vpop.permute.xlu0 %208
    %210 = vset.pattern.permute.xlu0 3
    %211 = vperm.xlu0 %210, %v30
    %v212 = vpop.permute.xlu0 %211
    %vm213 = vcmp.eq.s32.totalorder %v188, %v32
    %vm214 = vcmp.eq.s32.totalorder %v191, %v32
    %vm215 = vcmp.eq.s32.totalorder %v194, %v32
    %vm216 = vcmp.eq.s32.totalorder %v197, %v32
    %vm217 = vcmp.eq.s32.totalorder %v200, %v32
    %vm218 = vcmp.eq.s32.totalorder %v203, %v32
    %vm219 = vcmp.eq.s32.totalorder %v206, %v32
    %vm220 = vcmp.eq.s32.totalorder %v209, %v32
    %vm221 = vcmp.eq.s32.totalorder %v212, %v32
    %v222 = vsel %vm213, 1, 0
    %v223 = vsel %vm214, 1, 0
    %v224 = vsel %vm215, 1, 0
    %v225 = vsel %vm216, 1, 0
    %v226 = vsel %vm217, 1, 0
    %v227 = vsel %vm218, 1, 0
    %v228 = vsel %vm219, 1, 0
    %v229 = vsel %vm220, 1, 0
    %v230 = vsel %vm221, 1, 0
    %v231 = vadd.s32 %v177, %v222
    %v232 = vadd.s32 %v178, %v223
    %v233 = vadd.s32 %v179, %v224
    %v234 = vadd.s32 %v180, %v225
    %v235 = vadd.s32 %v181, %v226
    %v236 = vadd.s32 %v182, %v227
    %v237 = vadd.s32 %v183, %v228
    %v238 = vadd.s32 %v184, %v229
    %v239 = vadd.s32 %v185, %v230
    %240 = vset.pattern.permute.xlu0 4
    %241 = vperm.xlu0 %240, %v22
    %v242 = vpop.permute.xlu0 %241
    %243 = vset.pattern.permute.xlu0 4
    %244 = vperm.xlu0 %243, %v23
    %v245 = vpop.permute.xlu0 %244
    %246 = vset.pattern.permute.xlu0 4
    %247 = vperm.xlu0 %246, %v24
    %v248 = vpop.permute.xlu0 %247
    %249 = vset.pattern.permute.xlu0 4
    %250 = vperm.xlu0 %249, %v25
    %v251 = vpop.permute.xlu0 %250
    %252 = vset.pattern.permute.xlu0 4
    %253 = vperm.xlu0 %252, %v26
    %v254 = vpop.permute.xlu0 %253
    %255 = vset.pattern.permute.xlu0 4
    %256 = vperm.xlu0 %255, %v27
    %v257 = vpop.permute.xlu0 %256
    %258 = vset.pattern.permute.xlu0 4
    %259 = vperm.xlu0 %258, %v28
    %v260 = vpop.permute.xlu0 %259
    %261 = vset.pattern.permute.xlu0 4
    %262 = vperm.xlu0 %261, %v29
    %v263 = vpop.permute.xlu0 %262
    %264 = vset.pattern.permute.xlu0 4
    %265 = vperm.xlu0 %264, %v30
    %v266 = vpop.permute.xlu0 %265
    %vm267 = vcmp.eq.s32.totalorder %v242, %v32
    %vm268 = vcmp.eq.s32.totalorder %v245, %v32
    %vm269 = vcmp.eq.s32.totalorder %v248, %v32
    %vm270 = vcmp.eq.s32.totalorder %v251, %v32
    %vm271 = vcmp.eq.s32.totalorder %v254, %v32
    %vm272 = vcmp.eq.s32.totalorder %v257, %v32
    %vm273 = vcmp.eq.s32.totalorder %v260, %v32
    %vm274 = vcmp.eq.s32.totalorder %v263, %v32
    %vm275 = vcmp.eq.s32.totalorder %v266, %v32
    %v276 = vsel %vm267, 1, 0
    %v277 = vsel %vm268, 1, 0
    %v278 = vsel %vm269, 1, 0
    %v279 = vsel %vm270, 1, 0
    %v280 = vsel %vm271, 1, 0
    %v281 = vsel %vm272, 1, 0
    %v282 = vsel %vm273, 1, 0
    %v283 = vsel %vm274, 1, 0
    %v284 = vsel %vm275, 1, 0
    %v285 = vadd.s32 %v231, %v276
    %v286 = vadd.s32 %v232, %v277
    %v287 = vadd.s32 %v233, %v278
    %v288 = vadd.s32 %v234, %v279
    %v289 = vadd.s32 %v235, %v280
    %v290 = vadd.s32 %v236, %v281
    %v291 = vadd.s32 %v237, %v282
    %v292 = vadd.s32 %v238, %v283
    %v293 = vadd.s32 %v239, %v284
    %294 = vset.pattern.permute.xlu0 5
    %295 = vperm.xlu0 %294, %v22
    %v296 = vpop.permute.xlu0 %295
    %297 = vset.pattern.permute.xlu0 5
    %298 = vperm.xlu0 %297, %v23
    %v299 = vpop.permute.xlu0 %298
    %300 = vset.pattern.permute.xlu0 5
    %301 = vperm.xlu0 %300, %v24
    %v302 = vpop.permute.xlu0 %301
    %303 = vset.pattern.permute.xlu0 5
    %304 = vperm.xlu0 %303, %v25
    %v305 = vpop.permute.xlu0 %304
    %306 = vset.pattern.permute.xlu0 5
    %307 = vperm.xlu0 %306, %v26
    %v308 = vpop.permute.xlu0 %307
    %309 = vset.pattern.permute.xlu0 5
    %310 = vperm.xlu0 %309, %v27
    %v311 = vpop.permute.xlu0 %310
    %312 = vset.pattern.permute.xlu0 5
    %313 = vperm.xlu0 %312, %v28
    %v314 = vpop.permute.xlu0 %313
    %315 = vset.pattern.permute.xlu0 5
    %316 = vperm.xlu0 %315, %v29
    %v317 = vpop.permute.xlu0 %316
    %318 = vset.pattern.permute.xlu0 5
    %319 = vperm.xlu0 %318, %v30
    %v320 = vpop.permute.xlu0 %319
    %vm321 = vcmp.eq.s32.totalorder %v296, %v32
    %vm322 = vcmp.eq.s32.totalorder %v299, %v32
    %vm323 = vcmp.eq.s32.totalorder %v302, %v32
    %vm324 = vcmp.eq.s32.totalorder %v305, %v32
    %vm325 = vcmp.eq.s32.totalorder %v308, %v32
    %vm326 = vcmp.eq.s32.totalorder %v311, %v32
    %vm327 = vcmp.eq.s32.totalorder %v314, %v32
    %vm328 = vcmp.eq.s32.totalorder %v317, %v32
    %vm329 = vcmp.eq.s32.totalorder %v320, %v32
    %v330 = vsel %vm321, 1, 0
    %v331 = vsel %vm322, 1, 0
    %v332 = vsel %vm323, 1, 0
    %v333 = vsel %vm324, 1, 0
    %v334 = vsel %vm325, 1, 0
    %v335 = vsel %vm326, 1, 0
    %v336 = vsel %vm327, 1, 0
    %v337 = vsel %vm328, 1, 0
    %v338 = vsel %vm329, 1, 0
    %v339 = vadd.s32 %v285, %v330
    %v340 = vadd.s32 %v286, %v331
    %v341 = vadd.s32 %v287, %v332
    %v342 = vadd.s32 %v288, %v333
    %v343 = vadd.s32 %v289, %v334
    %v344 = vadd.s32 %v290, %v335
    %v345 = vadd.s32 %v291, %v336
    %v346 = vadd.s32 %v292, %v337
    %v347 = vadd.s32 %v293, %v338
    %v348 = vcvt.s32.f32 %v339
    %v349 = vcvt.s32.f32 %v340
    %v350 = vcvt.s32.f32 %v341
    %v351 = vcvt.s32.f32 %v342
    %v352 = vcvt.s32.f32 %v343
    %v353 = vcvt.s32.f32 %v344
    %v354 = vcvt.s32.f32 %v345
    %v355 = vcvt.s32.f32 %v346
    %v356 = vcvt.s32.f32 %v347
    %v357 = vpack.c.bf16 %v349, %v348
    %v358 = vpack.c.bf16 %v351, %v350
    %v359 = vpack.c.bf16 %v353, %v352
    %v360 = vpack.c.bf16 %v355, %v354
    %v361 = vpack.c.bf16 %v356, %v356
    %v362 = vld [vmem:[%s2] sm:$0xf]
    %v363 = vld [vmem:[%s2 + $0x4] sm:$0xf]
    %v364 = vld [vmem:[%s2 + $0x8] sm:$0xf]
    %v365 = vld [vmem:[%s2 + $0xc] sm:$0xf]
    %v366 = vld [vmem:[%s2 + $0x10] sm:$0xf]
    %v367 = vld [vmem:[%s2 + $0x14] sm:$0xf]
    %v368 = vld [vmem:[%s2 + $0x18] sm:$0xf]
    %v369 = vld [vmem:[%s2 + $0x1c] sm:$0xf]
    %v370 = vld [vmem:[%s2 + $0x20] sm:$0xf]
    %v371 = vld [vmem:[%s2 + $0x24] sm:$0xf]
    %v372 = vld [vmem:[%s2 + $0x28] sm:$0xf]
    %v373 = vld [vmem:[%s2 + $0x2c] sm:$0xf]
    %v374 = vld [vmem:[%s2 + $0x30] sm:$0xf]
    %v375 = vld [vmem:[%s2 + $0x34] sm:$0xf]
    %v376 = vld [vmem:[%s2 + $0x38] sm:$0xf]
    %v377 = vld [vmem:[%s2 + $0x3c] sm:$0xf]
    %v394 = vunpack.c.l.b16 %v362
    %v395 = vunpack.c.l.b16 %v363
    %v396 = vunpack.c.l.b16 %v364
    %v397 = vunpack.c.l.b16 %v365
    %v398 = vunpack.c.l.b16 %v366
    %v399 = vunpack.c.l.b16 %v367
    %v400 = vunpack.c.l.b16 %v368
    %v401 = vunpack.c.l.b16 %v369
    %v402 = vunpack.c.l.b16 %v370
    %v403 = vunpack.c.l.b16 %v371
    %v404 = vunpack.c.l.b16 %v372
    %v405 = vunpack.c.l.b16 %v373
    %v406 = vunpack.c.l.b16 %v374
    %v407 = vunpack.c.l.b16 %v375
    %v408 = vunpack.c.l.b16 %v376
    %v409 = vunpack.c.l.b16 %v377
    %v410 = vpack.c.b16 %v395, %v394
    %v411 = vpack.c.b16 %v397, %v396
    %v412 = vpack.c.b16 %v399, %v398
    %v413 = vpack.c.b16 %v401, %v400
    %v414 = vpack.c.b16 %v403, %v402
    %v415 = vpack.c.b16 %v405, %v404
    %v416 = vpack.c.b16 %v407, %v406
    %v417 = vpack.c.b16 %v409, %v408
    %426 = vmatprep.subr.bf16.mxu0 0
    %427 = vmatpush1.bf16.msra.mxu0 %v410
    %428 = vmatprep.subr.bf16.mxu0 0
    %429 = vmatpush1.bf16.msra.mxu0 %v411
    %430 = vmatprep.subr.bf16.mxu0 0
    %431 = vmatpush1.bf16.msra.mxu0 %v412
    %432 = vmatprep.subr.bf16.mxu0 0
    %433 = vmatpush1.bf16.msra.mxu0 %v413
    %434 = vmatprep.subr.bf16.mxu0 0
    %435 = vmatpush1.bf16.msra.mxu0 %v414
    %436 = vmatprep.subr.bf16.mxu0 0
    %437 = vmatpush1.bf16.msra.mxu0 %v415
    %438 = vmatprep.subr.bf16.mxu0 0
    %439 = vmatpush1.bf16.msra.mxu0 %v416
    %440 = vmatprep.subr.bf16.mxu0 0
    %441 = vmatpush1.bf16.msra.mxu0 %v417
    %442 = vmatprep.subr.bf16.mxu0 0
    %443 = vmatpush1.bf16.msra.mxu0 0
    %444 = vmatprep.subr.bf16.mxu0 0
    %445 = vmatpush1.bf16.msra.mxu0 0
    %446 = vmatprep.subr.bf16.mxu0 0
    %447 = vmatpush1.bf16.msra.mxu0 0
    %448 = vmatprep.subr.bf16.mxu0 0
    %449 = vmatpush1.bf16.msra.mxu0 0
    %450 = vmatprep.subr.bf16.mxu0 0
    %451 = vmatpush1.bf16.msra.mxu0 0
    %452 = vmatprep.subr.bf16.mxu0 0
    %453 = vmatpush1.bf16.msra.mxu0 0
    %454 = vmatprep.subr.bf16.mxu0 0
    %455 = vmatpush1.bf16.msra.mxu0 0
    %456 = vmatprep.subr.bf16.mxu0 0
    %457 = vmatpush1.bf16.msra.mxu0 0
    %458 = vmatprep.mubr.bf16.mxu0 0
    %459 = vmatmul.mubr.bf16.gmra.mrb[0].mxu0 %v357
    %v460 = vpop.f32.mrb[0].mxu0
    %v461 = vadd.f32 0.0, %v460
    %v462 = vpop.f32.mrb[0].mxu0
    %v463 = vpop.f32.mrb[0].mxu0
    %v464 = vadd.f32 0.0, %v463
    %v465 = vpop.f32.mrb[0].mxu0
    %466 = vmatprep.mubr.bf16.mxu0 0
    %467 = vmatmul.mubr.bf16.gmra.mrb[0].mxu0 %v358
    %v468 = vpop.f32.mrb[0].mxu0
    %v469 = vadd.f32 0.0, %v468
    %v470 = vpop.f32.mrb[0].mxu0
    %v471 = vpop.f32.mrb[0].mxu0
    %v472 = vadd.f32 0.0, %v471
    %v473 = vpop.f32.mrb[0].mxu0
    %474 = vmatprep.mubr.bf16.mxu0 0
    %475 = vmatmul.mubr.bf16.gmra.mrb[0].mxu0 %v359
    %v476 = vpop.f32.mrb[0].mxu0
    %v477 = vadd.f32 0.0, %v476
    %v478 = vpop.f32.mrb[0].mxu0
    %v479 = vpop.f32.mrb[0].mxu0
    %v480 = vadd.f32 0.0, %v479
    %v481 = vpop.f32.mrb[0].mxu0
    %482 = vmatprep.mubr.bf16.mxu0 0
    %483 = vmatmul.mubr.bf16.gmra.mrb[0].mxu0 %v360
    %v484 = vpop.f32.mrb[0].mxu0
    %v485 = vadd.f32 0.0, %v484
    %v486 = vpop.f32.mrb[0].mxu0
    %v487 = vpop.f32.mrb[0].mxu0
    %v488 = vadd.f32 0.0, %v487
    %v489 = vpop.f32.mrb[0].mxu0
    %490 = vmatprep.mubr.bf16.mxu0 0
    %491 = vmatmul.mubr.bf16.gmra.mrb[0].mxu0 %v361
    %v492 = vpop.f32.mrb[0].mxu0
    %v493 = vadd.f32 0.0, %v492
    %v494 = vpop.f32.mrb[0].mxu0
    %v495 = vpop.f32.mrb[0].mxu0
    %v496 = vpop.f32.mrb[0].mxu0
    %497 = vdwg.mxu0
    %v498 = vld [vmem:[%s1] sm:$0xf]
    %v499 = vlaneseq
    %v500 = vshrl.u32 %v499, 7
    %v501 = vadd.s32 %v500, 8
    %v502 = vadd.s32 %v500, 16
    %v503 = vadd.s32 %v500, 24
    %v504 = vadd.s32 %v500, 32
    %v505 = vadd.s32 %v500, 40
    %v506 = vadd.s32 %v500, 48
    %v507 = vadd.s32 %v500, 56
    %v508 = vadd.s32 %v500, 64
    %v509 = vadd.s32 %v500, 72
    %v510 = vadd.s32 %v500, 80
    %v511 = vadd.s32 %v500, 88
    %v512 = vadd.s32 %v500, 96
    %v513 = vadd.s32 %v500, 104
    %v514 = vadd.s32 %v500, 112
    %v515 = vadd.s32 %v500, 120
    %v516 = vlaneseq
    %v517 = vshrl.u32 %v516, 7
    %v518 = vsub.s32 0, %v517
    %v519 = vrot.slane %v498, %v518
    %vm520 = vcmp.eq.s32.totalorder %v519, %v500
    %vm521 = vcmp.eq.s32.totalorder %v519, %v501
    %vm522 = vcmp.eq.s32.totalorder %v519, %v502
    %vm523 = vcmp.eq.s32.totalorder %v519, %v503
    %vm524 = vcmp.eq.s32.totalorder %v519, %v504
    %vm525 = vcmp.eq.s32.totalorder %v519, %v505
    %vm526 = vcmp.eq.s32.totalorder %v519, %v506
    %vm527 = vcmp.eq.s32.totalorder %v519, %v507
    %vm528 = vcmp.eq.s32.totalorder %v519, %v508
    %vm529 = vcmp.eq.s32.totalorder %v519, %v509
    %vm530 = vcmp.eq.s32.totalorder %v519, %v510
    %vm531 = vcmp.eq.s32.totalorder %v519, %v511
    %vm532 = vcmp.eq.s32.totalorder %v519, %v512
    %vm533 = vcmp.eq.s32.totalorder %v519, %v513
    %vm534 = vcmp.eq.s32.totalorder %v519, %v514
    %vm535 = vcmp.eq.s32.totalorder %v519, %v515
    %v536 = vsel %vm520, 1, 0
    %v537 = vsel %vm521, 1, 0
    %v538 = vsel %vm522, 1, 0
    %v539 = vsel %vm523, 1, 0
    %v540 = vsel %vm524, 1, 0
    %v541 = vsel %vm525, 1, 0
    %v542 = vsel %vm526, 1, 0
    %v543 = vsel %vm527, 1, 0
    %v544 = vsel %vm528, 1, 0
    %v545 = vsel %vm529, 1, 0
    %v546 = vsel %vm530, 1, 0
    %v547 = vsel %vm531, 1, 0
    %v548 = vsel %vm532, 1, 0
    %v549 = vsel %vm533, 1, 0
    %v550 = vsel %vm534, 1, 0
    %v551 = vsel %vm535, 1, 0
    %v552 = vlaneseq
    %v553 = vshrl.u32 %v552, 7
    %v554 = vsub.s32 1, %v553
    %v555 = vrot.slane %v498, %v554
    %vm556 = vcmp.eq.s32.totalorder %v555, %v500
    %vm557 = vcmp.eq.s32.totalorder %v555, %v501
    %vm558 = vcmp.eq.s32.totalorder %v555, %v502
    %vm559 = vcmp.eq.s32.totalorder %v555, %v503
    %vm560 = vcmp.eq.s32.totalorder %v555, %v504
    %vm561 = vcmp.eq.s32.totalorder %v555, %v505
    %vm562 = vcmp.eq.s32.totalorder %v555, %v506
    %vm563 = vcmp.eq.s32.totalorder %v555, %v507
    %vm564 = vcmp.eq.s32.totalorder %v555, %v508
    %vm565 = vcmp.eq.s32.totalorder %v555, %v509
    %vm566 = vcmp.eq.s32.totalorder %v555, %v510
    %vm567 = vcmp.eq.s32.totalorder %v555, %v511
    %vm568 = vcmp.eq.s32.totalorder %v555, %v512
    %vm569 = vcmp.eq.s32.totalorder %v555, %v513
    %vm570 = vcmp.eq.s32.totalorder %v555, %v514
    %vm571 = vcmp.eq.s32.totalorder %v555, %v515
    %v572 = vsel %vm556, 1, 0
    %v573 = vsel %vm557, 1, 0
    %v574 = vsel %vm558, 1, 0
    %v575 = vsel %vm559, 1, 0
    %v576 = vsel %vm560, 1, 0
    %v577 = vsel %vm561, 1, 0
    %v578 = vsel %vm562, 1, 0
    %v579 = vsel %vm563, 1, 0
    %v580 = vsel %vm564, 1, 0
    %v581 = vsel %vm565, 1, 0
    %v582 = vsel %vm566, 1, 0
    %v583 = vsel %vm567, 1, 0
    %v584 = vsel %vm568, 1, 0
    %v585 = vsel %vm569, 1, 0
    %v586 = vsel %vm570, 1, 0
    %v587 = vsel %vm571, 1, 0
    %v588 = vadd.s32 %v536, %v572
    %v589 = vadd.s32 %v537, %v573
    %v590 = vadd.s32 %v538, %v574
    %v591 = vadd.s32 %v539, %v575
    %v592 = vadd.s32 %v540, %v576
    %v593 = vadd.s32 %v541, %v577
    %v594 = vadd.s32 %v542, %v578
    %v595 = vadd.s32 %v543, %v579
    %v596 = vadd.s32 %v544, %v580
    %v597 = vadd.s32 %v545, %v581
    %v598 = vadd.s32 %v546, %v582
    %v599 = vadd.s32 %v547, %v583
    %v600 = vadd.s32 %v548, %v584
    %v601 = vadd.s32 %v549, %v585
    %v602 = vadd.s32 %v550, %v586
    %v603 = vadd.s32 %v551, %v587
    %v604 = vlaneseq
    %v605 = vshrl.u32 %v604, 7
    %v606 = vsub.s32 2, %v605
    %v607 = vrot.slane %v498, %v606
    %vm608 = vcmp.eq.s32.totalorder %v607, %v500
    %vm609 = vcmp.eq.s32.totalorder %v607, %v501
    %vm610 = vcmp.eq.s32.totalorder %v607, %v502
    %vm611 = vcmp.eq.s32.totalorder %v607, %v503
    %vm612 = vcmp.eq.s32.totalorder %v607, %v504
    %vm613 = vcmp.eq.s32.totalorder %v607, %v505
    %vm614 = vcmp.eq.s32.totalorder %v607, %v506
    %vm615 = vcmp.eq.s32.totalorder %v607, %v507
    %vm616 = vcmp.eq.s32.totalorder %v607, %v508
    %vm617 = vcmp.eq.s32.totalorder %v607, %v509
    %vm618 = vcmp.eq.s32.totalorder %v607, %v510
    %vm619 = vcmp.eq.s32.totalorder %v607, %v511
    %vm620 = vcmp.eq.s32.totalorder %v607, %v512
    %vm621 = vcmp.eq.s32.totalorder %v607, %v513
    %vm622 = vcmp.eq.s32.totalorder %v607, %v514
    %vm623 = vcmp.eq.s32.totalorder %v607, %v515
    %v624 = vsel %vm608, 1, 0
    %v625 = vsel %vm609, 1, 0
    %v626 = vsel %vm610, 1, 0
    %v627 = vsel %vm611, 1, 0
    %v628 = vsel %vm612, 1, 0
    %v629 = vsel %vm613, 1, 0
    %v630 = vsel %vm614, 1, 0
    %v631 = vsel %vm615, 1, 0
    %v632 = vsel %vm616, 1, 0
    %v633 = vsel %vm617, 1, 0
    %v634 = vsel %vm618, 1, 0
    %v635 = vsel %vm619, 1, 0
    %v636 = vsel %vm620, 1, 0
    %v637 = vsel %vm621, 1, 0
    %v638 = vsel %vm622, 1, 0
    %v639 = vsel %vm623, 1, 0
    %v640 = vadd.s32 %v588, %v624
    %v641 = vadd.s32 %v589, %v625
    %v642 = vadd.s32 %v590, %v626
    %v643 = vadd.s32 %v591, %v627
    %v644 = vadd.s32 %v592, %v628
    %v645 = vadd.s32 %v593, %v629
    %v646 = vadd.s32 %v594, %v630
    %v647 = vadd.s32 %v595, %v631
    %v648 = vadd.s32 %v596, %v632
    %v649 = vadd.s32 %v597, %v633
    %v650 = vadd.s32 %v598, %v634
    %v651 = vadd.s32 %v599, %v635
    %v652 = vadd.s32 %v600, %v636
    %v653 = vadd.s32 %v601, %v637
    %v654 = vadd.s32 %v602, %v638
    %v655 = vadd.s32 %v603, %v639
    %v656 = vlaneseq
    %v657 = vshrl.u32 %v656, 7
    %v658 = vsub.s32 3, %v657
    %v659 = vrot.slane %v498, %v658
    %vm660 = vcmp.eq.s32.totalorder %v659, %v500
    %vm661 = vcmp.eq.s32.totalorder %v659, %v501
    %vm662 = vcmp.eq.s32.totalorder %v659, %v502
    %vm663 = vcmp.eq.s32.totalorder %v659, %v503
    %vm664 = vcmp.eq.s32.totalorder %v659, %v504
    %vm665 = vcmp.eq.s32.totalorder %v659, %v505
    %vm666 = vcmp.eq.s32.totalorder %v659, %v506
    %vm667 = vcmp.eq.s32.totalorder %v659, %v507
    %vm668 = vcmp.eq.s32.totalorder %v659, %v508
    %vm669 = vcmp.eq.s32.totalorder %v659, %v509
    %vm670 = vcmp.eq.s32.totalorder %v659, %v510
    %vm671 = vcmp.eq.s32.totalorder %v659, %v511
    %vm672 = vcmp.eq.s32.totalorder %v659, %v512
    %vm673 = vcmp.eq.s32.totalorder %v659, %v513
    %vm674 = vcmp.eq.s32.totalorder %v659, %v514
    %vm675 = vcmp.eq.s32.totalorder %v659, %v515
    %v676 = vsel %vm660, 1, 0
    %v677 = vsel %vm661, 1, 0
    %v678 = vsel %vm662, 1, 0
    %v679 = vsel %vm663, 1, 0
    %v680 = vsel %vm664, 1, 0
    %v681 = vsel %vm665, 1, 0
    %v682 = vsel %vm666, 1, 0
    %v683 = vsel %vm667, 1, 0
    %v684 = vsel %vm668, 1, 0
    %v685 = vsel %vm669, 1, 0
    %v686 = vsel %vm670, 1, 0
    %v687 = vsel %vm671, 1, 0
    %v688 = vsel %vm672, 1, 0
    %v689 = vsel %vm673, 1, 0
    %v690 = vsel %vm674, 1, 0
    %v691 = vsel %vm675, 1, 0
    %v692 = vadd.s32 %v640, %v676
    %v693 = vadd.s32 %v641, %v677
    %v694 = vadd.s32 %v642, %v678
    %v695 = vadd.s32 %v643, %v679
    %v696 = vadd.s32 %v644, %v680
    %v697 = vadd.s32 %v645, %v681
    %v698 = vadd.s32 %v646, %v682
    %v699 = vadd.s32 %v647, %v683
    %v700 = vadd.s32 %v648, %v684
    %v701 = vadd.s32 %v649, %v685
    %v702 = vadd.s32 %v650, %v686
    %v703 = vadd.s32 %v651, %v687
    %v704 = vadd.s32 %v652, %v688
    %v705 = vadd.s32 %v653, %v689
    %v706 = vadd.s32 %v654, %v690
    %v707 = vadd.s32 %v655, %v691
    %v708 = vld [vmem:[%s3] sm:$0xf]
    %v709 = vld [vmem:[%s3 + $0x4] sm:$0xf]
    %v710 = vld [vmem:[%s3 + $0x8] sm:$0xf]
    %v711 = vld [vmem:[%s3 + $0xc] sm:$0xf]
    %v712 = vld [vmem:[%s3 + $0x10] sm:$0xf]
    %v713 = vld [vmem:[%s3 + $0x14] sm:$0xf]
    %v714 = vld [vmem:[%s3 + $0x18] sm:$0xf]
    %v715 = vld [vmem:[%s3 + $0x1c] sm:$0xf]
    %v716 = vld [vmem:[%s3 + $0x20] sm:$0xf]
    %v717 = vld [vmem:[%s3 + $0x24] sm:$0xf]
    %v718 = vld [vmem:[%s3 + $0x28] sm:$0xf]
    %v719 = vld [vmem:[%s3 + $0x2c] sm:$0xf]
    %v720 = vld [vmem:[%s3 + $0x30] sm:$0xf]
    %v721 = vld [vmem:[%s3 + $0x34] sm:$0xf]
    %v722 = vld [vmem:[%s3 + $0x38] sm:$0xf]
    %v723 = vld [vmem:[%s3 + $0x3c] sm:$0xf]
    %v724 = vcvt.s32.f32 %v692
    %v725 = vcvt.s32.f32 %v693
    %v726 = vcvt.s32.f32 %v694
    %v727 = vcvt.s32.f32 %v695
    %v728 = vcvt.s32.f32 %v696
    %v729 = vcvt.s32.f32 %v697
    %v730 = vcvt.s32.f32 %v698
    %v731 = vcvt.s32.f32 %v699
    %v732 = vcvt.s32.f32 %v700
    %v733 = vcvt.s32.f32 %v701
    %v734 = vcvt.s32.f32 %v702
    %v735 = vcvt.s32.f32 %v703
    %v736 = vcvt.s32.f32 %v704
    %v737 = vcvt.s32.f32 %v705
    %v738 = vcvt.s32.f32 %v706
    %v739 = vcvt.s32.f32 %v707
    %v740 = vpack.c.bf16 %v725, %v724
    %v741 = vpack.c.bf16 %v727, %v726
    %v742 = vpack.c.bf16 %v729, %v728
    %v743 = vpack.c.bf16 %v731, %v730
    %v744 = vpack.c.bf16 %v733, %v732
    %v745 = vpack.c.bf16 %v735, %v734
    %v746 = vpack.c.bf16 %v737, %v736
    %v747 = vpack.c.bf16 %v739, %v738
    %v764 = vunpack.c.l.b16 %v708
    %v765 = vunpack.c.l.b16 %v709
    %v766 = vunpack.c.l.b16 %v710
    %v767 = vunpack.c.l.b16 %v711
    %v768 = vunpack.c.l.b16 %v712
    %v769 = vunpack.c.l.b16 %v713
    %v770 = vunpack.c.l.b16 %v714
    %v771 = vunpack.c.l.b16 %v715
    %v772 = vunpack.c.l.b16 %v716
    %v773 = vunpack.c.l.b16 %v717
    %v774 = vunpack.c.l.b16 %v718
    %v775 = vunpack.c.l.b16 %v719
    %v776 = vunpack.c.l.b16 %v720
    %v777 = vunpack.c.l.b16 %v721
    %v778 = vunpack.c.l.b16 %v722
    %v779 = vunpack.c.l.b16 %v723
    %v780 = vpack.c.b16 %v765, %v764
    %v781 = vpack.c.b16 %v767, %v766
    %v782 = vpack.c.b16 %v769, %v768
    %v783 = vpack.c.b16 %v771, %v770
    %v784 = vpack.c.b16 %v773, %v772
    %v785 = vpack.c.b16 %v775, %v774
    %v786 = vpack.c.b16 %v777, %v776
    %v787 = vpack.c.b16 %v779, %v778
    %796 = vmatprep.subr.bf16.mxu0 0
    %797 = vmatpush1.bf16.msra.mxu0 %v740
    %798 = vmatprep.subr.bf16.mxu0 0
    %799 = vmatpush1.bf16.msra.mxu0 %v741
    %800 = vmatprep.subr.bf16.mxu0 0
    %801 = vmatpush1.bf16.msra.mxu0 %v742
    %802 = vmatprep.subr.bf16.mxu0 0
    %803 = vmatpush1.bf16.msra.mxu0 %v743
    %804 = vmatprep.subr.bf16.mxu0 0
    %805 = vmatpush1.bf16.msra.mxu0 %v744
    %806 = vmatprep.subr.bf16.mxu0 0
    %807 = vmatpush1.bf16.msra.mxu0 %v745
    %808 = vmatprep.subr.bf16.mxu0 0
    %809 = vmatpush1.bf16.msra.mxu0 %v746
    %810 = vmatprep.subr.bf16.mxu0 0
    %811 = vmatpush1.bf16.msra.mxu0 %v747
    %812 = vmatprep.subr.bf16.mxu0 0
    %813 = vmatpush1.bf16.msra.mxu0 0
    %814 = vmatprep.subr.bf16.mxu0 0
    %815 = vmatpush1.bf16.msra.mxu0 0
    %816 = vmatprep.subr.bf16.mxu0 0
    %817 = vmatpush1.bf16.msra.mxu0 0
    %818 = vmatprep.subr.bf16.mxu0 0
    %819 = vmatpush1.bf16.msra.mxu0 0
    %820 = vmatprep.subr.bf16.mxu0 0
    %821 = vmatpush1.bf16.msra.mxu0 0
    %822 = vmatprep.subr.bf16.mxu0 0
    %823 = vmatpush1.bf16.msra.mxu0 0
    %824 = vmatprep.subr.bf16.mxu0 0
    %825 = vmatpush1.bf16.msra.mxu0 0
    %826 = vmatprep.subr.bf16.mxu0 0
    %827 = vmatpush1.bf16.msra.mxu0 0
    %828 = vmatprep.mubr.bf16.mxu0 0
    %829 = vmatmul.mubr.bf16.gmra.mrb[0].mxu0 %v780
    %v830 = vpop.f32.mrb[0].mxu0
    %v831 = vadd.f32 0.0, %v830
    %v832 = vpop.f32.mrb[0].mxu0
    %v833 = vpop.f32.mrb[0].mxu0
    %v834 = vadd.f32 0.0, %v833
    %v835 = vpop.f32.mrb[0].mxu0
    %836 = vmatprep.mubr.bf16.mxu0 0
    %837 = vmatmul.mubr.bf16.gmra.mrb[0].mxu0 %v781
    %v838 = vpop.f32.mrb[0].mxu0
    %v839 = vadd.f32 0.0, %v838
    %v840 = vpop.f32.mrb[0].mxu0
    %v841 = vpop.f32.mrb[0].mxu0
    %v842 = vadd.f32 0.0, %v841
    %v843 = vpop.f32.mrb[0].mxu0
    %844 = vmatprep.mubr.bf16.mxu0 0
    %845 = vmatmul.mubr.bf16.gmra.mrb[0].mxu0 %v782
    %v846 = vpop.f32.mrb[0].mxu0
    %v847 = vadd.f32 0.0, %v846
    %v848 = vpop.f32.mrb[0].mxu0
    %v849 = vpop.f32.mrb[0].mxu0
    %v850 = vadd.f32 0.0, %v849
    %v851 = vpop.f32.mrb[0].mxu0
    %852 = vmatprep.mubr.bf16.mxu0 0
    %853 = vmatmul.mubr.bf16.gmra.mrb[0].mxu0 %v783
    %v854 = vpop.f32.mrb[0].mxu0
    %v855 = vadd.f32 0.0, %v854
    %v856 = vpop.f32.mrb[0].mxu0
    %v857 = vpop.f32.mrb[0].mxu0
    %v858 = vadd.f32 0.0, %v857
    %v859 = vpop.f32.mrb[0].mxu0
    %860 = vmatprep.mubr.bf16.mxu0 0
    %861 = vmatmul.mubr.bf16.gmra.mrb[0].mxu0 %v784
    %v862 = vpop.f32.mrb[0].mxu0
    %v863 = vadd.f32 0.0, %v862
    %v864 = vpop.f32.mrb[0].mxu0
    %v865 = vpop.f32.mrb[0].mxu0
    %v866 = vadd.f32 0.0, %v865
    %v867 = vpop.f32.mrb[0].mxu0
    %868 = vmatprep.mubr.bf16.mxu0 0
    %869 = vmatmul.mubr.bf16.gmra.mrb[0].mxu0 %v785
    %v870 = vpop.f32.mrb[0].mxu0
    %v871 = vadd.f32 0.0, %v870
    %v872 = vpop.f32.mrb[0].mxu0
    %v873 = vpop.f32.mrb[0].mxu0
    %v874 = vadd.f32 0.0, %v873
    %v875 = vpop.f32.mrb[0].mxu0
    %876 = vmatprep.mubr.bf16.mxu0 0
    %877 = vmatmul.mubr.bf16.gmra.mrb[0].mxu0 %v786
    %v878 = vpop.f32.mrb[0].mxu0
    %v879 = vadd.f32 0.0, %v878
    %v880 = vpop.f32.mrb[0].mxu0
    %v881 = vpop.f32.mrb[0].mxu0
    %v882 = vadd.f32 0.0, %v881
    %v883 = vpop.f32.mrb[0].mxu0
    %884 = vmatprep.mubr.bf16.mxu0 0
    %885 = vmatmul.mubr.bf16.gmra.mrb[0].mxu0 %v787
    %v886 = vpop.f32.mrb[0].mxu0
    %v887 = vadd.f32 0.0, %v886
    %v888 = vpop.f32.mrb[0].mxu0
    %v889 = vpop.f32.mrb[0].mxu0
    %v890 = vadd.f32 0.0, %v889
    %v891 = vpop.f32.mrb[0].mxu0
    %892 = vdwg.mxu0
    %v893 = vpack.c.bf16 %v834, %v831
    %v894 = vpack.c.bf16 %v842, %v839
    %v895 = vpack.c.bf16 %v850, %v847
    %v896 = vpack.c.bf16 %v858, %v855
    %v897 = vpack.c.bf16 %v866, %v863
    %v898 = vpack.c.bf16 %v874, %v871
    %v899 = vpack.c.bf16 %v882, %v879
    %v900 = vpack.c.bf16 %v890, %v887
    %v901 = vld [vmem:[%s4] sm:$0xf]
    %v902 = vld [vmem:[%s4 + $0x4] sm:$0xf]
    %v903 = vld [vmem:[%s4 + $0x8] sm:$0xf]
    %v904 = vld [vmem:[%s4 + $0xc] sm:$0xf]
    %v905 = vld [vmem:[%s4 + $0x10] sm:$0xf]
    %v906 = vld [vmem:[%s4 + $0x14] sm:$0xf]
    %v907 = vld [vmem:[%s4 + $0x18] sm:$0xf]
    %v908 = vld [vmem:[%s4 + $0x1c] sm:$0xf]
    %v909 = vld [vmem:[%s4 + $0x20] sm:$0xf]
    %v910 = vld [vmem:[%s4 + $0x24] sm:$0xf]
    %v911 = vld [vmem:[%s4 + $0x28] sm:$0xf]
    %v912 = vld [vmem:[%s4 + $0x2c] sm:$0xf]
    %v913 = vld [vmem:[%s4 + $0x30] sm:$0xf]
    %v914 = vld [vmem:[%s4 + $0x34] sm:$0xf]
    %v915 = vld [vmem:[%s4 + $0x38] sm:$0xf]
    %v916 = vld [vmem:[%s4 + $0x3c] sm:$0xf]
    %v918 = vcombine.high %v493, %v493
    %v920 = vunpack.c.l.s4 1966171168
    %v921 = vunpack.c.0.s8 %v920
    %v922 = vlaneseq
    %v923 = vshrl.u32 %v922, 7
    %v924 = vsub.s32 %v921, %v923
    %v925 = vrot.slane %v493, %v924
    %v927 = vunpack.c.l.s4 1966171168
    %v928 = vunpack.c.0.s8 %v927
    %v929 = vlaneseq
    %v930 = vshrl.u32 %v929, 7
    %v931 = vsub.s32 %v928, %v930
    %v932 = vrot.slane %v918, %v931
    %v933 = vcombine.high %v925, %v925
    %v934 = vcombine.high %v932, %v932
    %v936 = vunpack.c.l.s4 1966171168
    %v937 = vunpack.c.0.s8 %v936
    %v938 = vlaneseq
    %v939 = vshrl.u32 %v938, 7
    %v940 = vsub.s32 %v937, %v939
    %v941 = vrot.slane %v925, %v940
    %v943 = vunpack.c.l.s4 1966171168
    %v944 = vunpack.c.0.s8 %v943
    %v945 = vlaneseq
    %v946 = vshrl.u32 %v945, 7
    %v947 = vsub.s32 %v944, %v946
    %v948 = vrot.slane %v932, %v947
    %v950 = vunpack.c.l.s4 1966171168
    %v951 = vunpack.c.0.s8 %v950
    %v952 = vlaneseq
    %v953 = vshrl.u32 %v952, 7
    %v954 = vsub.s32 %v951, %v953
    %v955 = vrot.slane %v933, %v954
    %v957 = vunpack.c.l.s4 1966171168
    %v958 = vunpack.c.0.s8 %v957
    %v959 = vlaneseq
    %v960 = vshrl.u32 %v959, 7
    %v961 = vsub.s32 %v958, %v960
    %v962 = vrot.slane %v934, %v961
    %v963 = vcombine.high %v941, %v941
    %v964 = vcombine.high %v948, %v948
    %v965 = vcombine.high %v955, %v955
    %v966 = vcombine.high %v962, %v962
    %v967 = vlaneseq
    %v968 = vshrl.u32 %v967, 7
    %v969 = vsub.s32 0, %v968
    %v970 = vrot.slane %v941, %v969
    %v971 = vlaneseq
    %v972 = vshrl.u32 %v971, 7
    %v973 = vsub.s32 0, %v972
    %v974 = vrot.slane %v955, %v973
    %v975 = vlaneseq
    %v976 = vshrl.u32 %v975, 7
    %v977 = vsub.s32 0, %v976
    %v978 = vrot.slane %v963, %v977
    %v979 = vlaneseq
    %v980 = vshrl.u32 %v979, 7
    %v981 = vsub.s32 0, %v980
    %v982 = vrot.slane %v965, %v981
    %v983 = vlaneseq
    %v984 = vshrl.u32 %v983, 7
    %v985 = vsub.s32 0, %v984
    %v986 = vrot.slane %v948, %v985
    %v987 = vlaneseq
    %v988 = vshrl.u32 %v987, 7
    %v989 = vsub.s32 0, %v988
    %v990 = vrot.slane %v962, %v989
    %v991 = vlaneseq
    %v992 = vshrl.u32 %v991, 7
    %v993 = vsub.s32 0, %v992
    %v994 = vrot.slane %v964, %v993
    %v995 = vlaneseq
    %v996 = vshrl.u32 %v995, 7
    %v997 = vsub.s32 0, %v996
    %v998 = vrot.slane %v966, %v997
    %v1007 = vmul.f32 %v461, %v970
    %v1008 = vmul.f32 %v464, %v974
    %v1009 = vmul.f32 %v469, %v978
    %v1010 = vmul.f32 %v472, %v982
    %v1011 = vmul.f32 %v477, %v986
    %v1012 = vmul.f32 %v480, %v990
    %v1013 = vmul.f32 %v485, %v994
    %v1014 = vmul.f32 %v488, %v998
    %1015 = vadd.xlane.f32.xlu0 %v1007
    %v1016 = vpop.xlane.xlu0 %1015
    %1017 = vadd.xlane.f32.xlu0 %v1008
    %v1018 = vpop.xlane.xlu0 %1017
    %1019 = vadd.xlane.f32.xlu0 %v1009
    %v1020 = vpop.xlane.xlu0 %1019
    %1021 = vadd.xlane.f32.xlu0 %v1010
    %v1022 = vpop.xlane.xlu0 %1021
    %1023 = vadd.xlane.f32.xlu0 %v1011
    %v1024 = vpop.xlane.xlu0 %1023
    %1025 = vadd.xlane.f32.xlu0 %v1012
    %v1026 = vpop.xlane.xlu0 %1025
    %1027 = vadd.xlane.f32.xlu0 %v1013
    %v1028 = vpop.xlane.xlu0 %1027
    %1029 = vadd.xlane.f32.xlu0 %v1014
    %v1030 = vpop.xlane.xlu0 %1029
    %v1039 = vlaneseq
    %v1040 = vshrl.u32 %v1039, 7
    %v1041 = vsub.s32 %v32, %v1040
    %v1042 = vrot.slane %v1016, %v1041
    %v1043 = vlaneseq
    %v1044 = vshrl.u32 %v1043, 7
    %v1045 = vsub.s32 %v32, %v1044
    %v1046 = vrot.slane %v1018, %v1045
    %v1047 = vlaneseq
    %v1048 = vshrl.u32 %v1047, 7
    %v1049 = vsub.s32 %v32, %v1048
    %v1050 = vrot.slane %v1020, %v1049
    %v1051 = vlaneseq
    %v1052 = vshrl.u32 %v1051, 7
    %v1053 = vsub.s32 %v32, %v1052
    %v1054 = vrot.slane %v1022, %v1053
    %v1055 = vlaneseq
    %v1056 = vshrl.u32 %v1055, 7
    %v1057 = vsub.s32 %v32, %v1056
    %v1058 = vrot.slane %v1024, %v1057
    %v1059 = vlaneseq
    %v1060 = vshrl.u32 %v1059, 7
    %v1061 = vsub.s32 %v32, %v1060
    %v1062 = vrot.slane %v1026, %v1061
    %v1063 = vlaneseq
    %v1064 = vshrl.u32 %v1063, 7
    %v1065 = vsub.s32 %v32, %v1064
    %v1066 = vrot.slane %v1028, %v1065
    %v1067 = vlaneseq
    %v1068 = vshrl.u32 %v1067, 7
    %v1069 = vsub.s32 %v32, %v1068
    %v1070 = vrot.slane %v1030, %v1069
    %vm1071 = vcmask 1041409
    %v1072 = vsel %vm1071, %v1046, %v1042
    %vm1073 = vcmask 1042434
    %v1074 = vsel %vm1073, %v1050, %v1072
    %vm1075 = vcmask 1043459
    %v1076 = vsel %vm1075, %v1054, %v1074
    %vm1077 = vcmask 1044484
    %v1078 = vsel %vm1077, %v1058, %v1076
    %vm1079 = vcmask 1045509
    %v1080 = vsel %vm1079, %v1062, %v1078
    %vm1081 = vcmask 1046534
    %v1082 = vsel %vm1081, %v1066, %v1080
    %vm1083 = vcmask 1047559
    %v1084 = vsel %vm1083, %v1070, %v1082
    %vm1086 = vcmask 64512
    %v1087 = vsel %vm1086, %v1084, -inf
    %1088 = vmax.xlane.f32.xlu0 %v1087
    %v1089 = vpop.xlane.xlu0 %1088
    %v1091 = vlaneseq
    %v1092 = vshrl.u32 %v1091, 7
    %v1093 = vsub.s32 0, %v1092
    %v1094 = vrot.slane %v1089, %v1093
    %v1095 = vlaneseq
    %v1096 = vshrl.u32 %v1095, 7
    %v1097 = vsub.s32 1, %v1096
    %v1098 = vrot.slane %v1089, %v1097
    %v1099 = vlaneseq
    %v1100 = vshrl.u32 %v1099, 7
    %v1101 = vsub.s32 2, %v1100
    %v1102 = vrot.slane %v1089, %v1101
    %v1103 = vlaneseq
    %v1104 = vshrl.u32 %v1103, 7
    %v1105 = vsub.s32 3, %v1104
    %v1106 = vrot.slane %v1089, %v1105
    %v1107 = vlaneseq
    %v1108 = vshrl.u32 %v1107, 7
    %v1109 = vsub.s32 4, %v1108
    %v1110 = vrot.slane %v1089, %v1109
    %v1111 = vlaneseq
    %v1112 = vshrl.u32 %v1111, 7
    %v1113 = vsub.s32 5, %v1112
    %v1114 = vrot.slane %v1089, %v1113
    %v1115 = vlaneseq
    %v1116 = vshrl.u32 %v1115, 7
    %v1117 = vsub.s32 6, %v1116
    %v1118 = vrot.slane %v1089, %v1117
    %v1119 = vlaneseq
    %v1120 = vshrl.u32 %v1119, 7
    %v1121 = vsub.s32 7, %v1120
    %v1122 = vrot.slane %v1089, %v1121
    %v1131 = vsub.f32 %v1016, %v1094
    %v1132 = vsub.f32 %v1018, %v1098
    %v1133 = vsub.f32 %v1020, %v1102
    %v1134 = vsub.f32 %v1022, %v1106
    %v1135 = vsub.f32 %v1024, %v1110
    %v1136 = vsub.f32 %v1026, %v1114
    %v1137 = vsub.f32 %v1028, %v1118
    %v1138 = vsub.f32 %v1030, %v1122
    %v1139 = vmul.f32 %v1131, 1.442695
    %v1140 = vpow.pop %v1139
    %v1141 = vmul.f32 %v1132, 1.442695
    %v1142 = vpow.pop %v1141
    %v1143 = vmul.f32 %v1133, 1.442695
    %v1144 = vpow.pop %v1143
    %v1145 = vmul.f32 %v1134, 1.442695
    %v1146 = vpow.pop %v1145
    %v1147 = vmul.f32 %v1135, 1.442695
    %v1148 = vpow.pop %v1147
    %v1149 = vmul.f32 %v1136, 1.442695
    %v1150 = vpow.pop %v1149
    %v1151 = vmul.f32 %v1137, 1.442695
    %v1152 = vpow.pop %v1151
    %v1153 = vmul.f32 %v1138, 1.442695
    %v1154 = vpow.pop %v1153
    %1163 = vset.pattern.permute.xlu0 0
    %1164 = vperm.xlu0 %1163, %v1140
    %v1165 = vpop.permute.xlu0 %1164
    %1166 = vset.pattern.permute.xlu0 0
    %1167 = vperm.xlu0 %1166, %v1142
    %v1168 = vpop.permute.xlu0 %1167
    %1169 = vset.pattern.permute.xlu0 0
    %1170 = vperm.xlu0 %1169, %v1144
    %v1171 = vpop.permute.xlu0 %1170
    %1172 = vset.pattern.permute.xlu0 0
    %1173 = vperm.xlu0 %1172, %v1146
    %v1174 = vpop.permute.xlu0 %1173
    %1175 = vset.pattern.permute.xlu0 0
    %1176 = vperm.xlu0 %1175, %v1148
    %v1177 = vpop.permute.xlu0 %1176
    %1178 = vset.pattern.permute.xlu0 0
    %1179 = vperm.xlu0 %1178, %v1150
    %v1180 = vpop.permute.xlu0 %1179
    %1181 = vset.pattern.permute.xlu0 0
    %1182 = vperm.xlu0 %1181, %v1152
    %v1183 = vpop.permute.xlu0 %1182
    %1184 = vset.pattern.permute.xlu0 0
    %1185 = vperm.xlu0 %1184, %v1154
    %v1186 = vpop.permute.xlu0 %1185
    %v1187 = vlaneseq
    %v1188 = vshrl.u32 %v1187, 7
    %v1189 = vsub.s32 %v32, %v1188
    %v1190 = vrot.slane %v1165, %v1189
    %v1191 = vlaneseq
    %v1192 = vshrl.u32 %v1191, 7
    %v1193 = vsub.s32 %v32, %v1192
    %v1194 = vrot.slane %v1168, %v1193
    %v1195 = vlaneseq
    %v1196 = vshrl.u32 %v1195, 7
    %v1197 = vsub.s32 %v32, %v1196
    %v1198 = vrot.slane %v1171, %v1197
    %v1199 = vlaneseq
    %v1200 = vshrl.u32 %v1199, 7
    %v1201 = vsub.s32 %v32, %v1200
    %v1202 = vrot.slane %v1174, %v1201
    %v1203 = vlaneseq
    %v1204 = vshrl.u32 %v1203, 7
    %v1205 = vsub.s32 %v32, %v1204
    %v1206 = vrot.slane %v1177, %v1205
    %v1207 = vlaneseq
    %v1208 = vshrl.u32 %v1207, 7
    %v1209 = vsub.s32 %v32, %v1208
    %v1210 = vrot.slane %v1180, %v1209
    %v1211 = vlaneseq
    %v1212 = vshrl.u32 %v1211, 7
    %v1213 = vsub.s32 %v32, %v1212
    %v1214 = vrot.slane %v1183, %v1213
    %v1215 = vlaneseq
    %v1216 = vshrl.u32 %v1215, 7
    %v1217 = vsub.s32 %v32, %v1216
    %v1218 = vrot.slane %v1186, %v1217
    %v1219 = vsel %vm1071, %v1194, %v1190
    %v1220 = vsel %vm1073, %v1198, %v1219
    %v1221 = vsel %vm1075, %v1202, %v1220
    %v1222 = vsel %vm1077, %v1206, %v1221
    %v1223 = vsel %vm1079, %v1210, %v1222
    %v1224 = vsel %vm1081, %v1214, %v1223
    %v1225 = vsel %vm1083, %v1218, %v1224
    %v1227 = vsel %vm1086, %v1225, 0.0
    %1228 = vadd.xlane.f32.xlu0 %v1227
    %v1229 = vpop.xlane.xlu0 %1228
    %v1230 = vrcp.pop %v1229
    %v1232 = vlaneseq
    %v1233 = vshrl.u32 %v1232, 7
    %v1234 = vsub.s32 0, %v1233
    %v1235 = vrot.slane %v1230, %v1234
    %v1236 = vlaneseq
    %v1237 = vshrl.u32 %v1236, 7
    %v1238 = vsub.s32 1, %v1237
    %v1239 = vrot.slane %v1230, %v1238
    %v1240 = vlaneseq
    %v1241 = vshrl.u32 %v1240, 7
    %v1242 = vsub.s32 2, %v1241
    %v1243 = vrot.slane %v1230, %v1242
    %v1244 = vlaneseq
    %v1245 = vshrl.u32 %v1244, 7
    %v1246 = vsub.s32 3, %v1245
    %v1247 = vrot.slane %v1230, %v1246
    %v1248 = vlaneseq
    %v1249 = vshrl.u32 %v1248, 7
    %v1250 = vsub.s32 4, %v1249
    %v1251 = vrot.slane %v1230, %v1250
    %v1252 = vlaneseq
    %v1253 = vshrl.u32 %v1252, 7
    %v1254 = vsub.s32 5, %v1253
    %v1255 = vrot.slane %v1230, %v1254
    %v1256 = vlaneseq
    %v1257 = vshrl.u32 %v1256, 7
    %v1258 = vsub.s32 6, %v1257
    %v1259 = vrot.slane %v1230, %v1258
    %v1260 = vlaneseq
    %v1261 = vshrl.u32 %v1260, 7
    %v1262 = vsub.s32 7, %v1261
    %v1263 = vrot.slane %v1230, %v1262
    %v1272 = vmul.f32 %v1140, %v1235
    %v1273 = vmul.f32 %v1142, %v1239
    %v1274 = vmul.f32 %v1144, %v1243
    %v1275 = vmul.f32 %v1146, %v1247
    %v1276 = vmul.f32 %v1148, %v1251
    %v1277 = vmul.f32 %v1150, %v1255
    %v1278 = vmul.f32 %v1152, %v1259
    %v1279 = vmul.f32 %v1154, %v1263
    %1281 = vset.pattern.permute.xlu0 0
    %1282 = vperm.xlu0 %1281, %v1272
    %v1283 = vpop.permute.xlu0 %1282
    %1286 = vset.pattern.permute.xlu0 0
    %1287 = vperm.xlu0 %1286, %v1273
    %v1288 = vpop.permute.xlu0 %1287
    %1291 = vset.pattern.permute.xlu0 0
    %1292 = vperm.xlu0 %1291, %v1274
    %v1293 = vpop.permute.xlu0 %1292
    %1296 = vset.pattern.permute.xlu0 0
    %1297 = vperm.xlu0 %1296, %v1275
    %v1298 = vpop.permute.xlu0 %1297
    %1301 = vset.pattern.permute.xlu0 0
    %1302 = vperm.xlu0 %1301, %v1276
    %v1303 = vpop.permute.xlu0 %1302
    %1306 = vset.pattern.permute.xlu0 0
    %1307 = vperm.xlu0 %1306, %v1277
    %v1308 = vpop.permute.xlu0 %1307
    %1311 = vset.pattern.permute.xlu0 0
    %1312 = vperm.xlu0 %1311, %v1278
    %v1313 = vpop.permute.xlu0 %1312
    %1316 = vset.pattern.permute.xlu0 0
    %1317 = vperm.xlu0 %1316, %v1279
    %v1318 = vpop.permute.xlu0 %1317
    %v1320 = vmul.f32 %v1283, %v461
    %v1321 = vmul.f32 %v1288, %v464
    %v1322 = vmul.f32 %v1293, %v469
    %v1323 = vmul.f32 %v1298, %v472
    %v1324 = vmul.f32 %v1303, %v477
    %v1325 = vmul.f32 %v1308, %v480
    %v1326 = vmul.f32 %v1313, %v485
    %v1327 = vmul.f32 %v1318, %v488
    %v1328 = vrot.slane %v1320, 4
    %v1329 = vadd.f32 %v1320, %v1328
    %v1330 = vrot.slane %v1329, 2
    %v1331 = vadd.f32 %v1329, %v1330
    %v1332 = vrot.slane %v1331, 1
    %v1333 = vadd.f32 %v1331, %v1332
    %v1334 = vrot.slane %v1321, 4
    %v1335 = vadd.f32 %v1321, %v1334
    %v1336 = vrot.slane %v1335, 2
    %v1337 = vadd.f32 %v1335, %v1336
    %v1338 = vrot.slane %v1337, 1
    %v1339 = vadd.f32 %v1337, %v1338
    %v1340 = vrot.slane %v1322, 4
    %v1341 = vadd.f32 %v1322, %v1340
    %v1342 = vrot.slane %v1341, 2
    %v1343 = vadd.f32 %v1341, %v1342
    %v1344 = vrot.slane %v1343, 1
    %v1345 = vadd.f32 %v1343, %v1344
    %v1346 = vrot.slane %v1323, 4
    %v1347 = vadd.f32 %v1323, %v1346
    %v1348 = vrot.slane %v1347, 2
    %v1349 = vadd.f32 %v1347, %v1348
    %v1350 = vrot.slane %v1349, 1
    %v1351 = vadd.f32 %v1349, %v1350
    %v1352 = vrot.slane %v1324, 4
    %v1353 = vadd.f32 %v1324, %v1352
    %v1354 = vrot.slane %v1353, 2
    %v1355 = vadd.f32 %v1353, %v1354
    %v1356 = vrot.slane %v1355, 1
    %v1357 = vadd.f32 %v1355, %v1356
    %v1358 = vrot.slane %v1325, 4
    %v1359 = vadd.f32 %v1325, %v1358
    %v1360 = vrot.slane %v1359, 2
    %v1361 = vadd.f32 %v1359, %v1360
    %v1362 = vrot.slane %v1361, 1
    %v1363 = vadd.f32 %v1361, %v1362
    %v1364 = vrot.slane %v1326, 4
    %v1365 = vadd.f32 %v1326, %v1364
    %v1366 = vrot.slane %v1365, 2
    %v1367 = vadd.f32 %v1365, %v1366
    %v1368 = vrot.slane %v1367, 1
    %v1369 = vadd.f32 %v1367, %v1368
    %v1370 = vrot.slane %v1327, 4
    %v1371 = vadd.f32 %v1327, %v1370
    %v1372 = vrot.slane %v1371, 2
    %v1373 = vadd.f32 %v1371, %v1372
    %v1374 = vrot.slane %v1373, 1
    %v1375 = vadd.f32 %v1373, %v1374
    %v1376 = vpack.c.bf16 %v493, %v493
    %v1393 = vunpack.c.l.b16 %v901
    %v1394 = vunpack.c.l.b16 %v902
    %v1395 = vunpack.c.l.b16 %v903
    %v1396 = vunpack.c.l.b16 %v904
    %v1397 = vunpack.c.l.b16 %v905
    %v1398 = vunpack.c.l.b16 %v906
    %v1399 = vunpack.c.l.b16 %v907
    %v1400 = vunpack.c.l.b16 %v908
    %v1401 = vunpack.c.l.b16 %v909
    %v1402 = vunpack.c.l.b16 %v910
    %v1403 = vunpack.c.l.b16 %v911
    %v1404 = vunpack.c.l.b16 %v912
    %v1405 = vunpack.c.l.b16 %v913
    %v1406 = vunpack.c.l.b16 %v914
    %v1407 = vunpack.c.l.b16 %v915
    %v1408 = vunpack.c.l.b16 %v916
    %v1409 = vpack.c.b16 %v1394, %v1393
    %v1410 = vpack.c.b16 %v1396, %v1395
    %v1411 = vpack.c.b16 %v1398, %v1397
    %v1412 = vpack.c.b16 %v1400, %v1399
    %v1413 = vpack.c.b16 %v1402, %v1401
    %v1414 = vpack.c.b16 %v1404, %v1403
    %v1415 = vpack.c.b16 %v1406, %v1405
    %v1416 = vpack.c.b16 %v1408, %v1407
    %v1433 = vsel %vm1071, %v1339, %v1333
    %v1434 = vsel %vm1073, %v1345, %v1433
    %v1435 = vsel %vm1075, %v1351, %v1434
    %v1436 = vsel %vm1077, %v1357, %v1435
    %v1437 = vsel %vm1079, %v1363, %v1436
    %v1438 = vsel %vm1081, %v1369, %v1437
    %v1439 = vsel %vm1083, %v1375, %v1438
    %1441 = vmatprep.subr.bf16.mxu0 0
    %1442 = vmatpush1.bf16.msra.mxu0 %v1409
    %1443 = vmatprep.subr.bf16.mxu0 0
    %1444 = vmatpush1.bf16.msra.mxu0 %v1410
    %1445 = vmatprep.subr.bf16.mxu0 0
    %1446 = vmatpush1.bf16.msra.mxu0 %v1411
    %1447 = vmatprep.subr.bf16.mxu0 0
    %1448 = vmatpush1.bf16.msra.mxu0 %v1412
    %1449 = vmatprep.subr.bf16.mxu0 0
    %1450 = vmatpush1.bf16.msra.mxu0 %v1413
    %1451 = vmatprep.subr.bf16.mxu0 0
    %1452 = vmatpush1.bf16.msra.mxu0 %v1414
    %1453 = vmatprep.subr.bf16.mxu0 0
    %1454 = vmatpush1.bf16.msra.mxu0 %v1415
    %1455 = vmatprep.subr.bf16.mxu0 0
    %1456 = vmatpush1.bf16.msra.mxu0 %v1416
    %1457 = vmatprep.subr.bf16.mxu0 0
    %1458 = vmatpush1.bf16.msra.mxu0 0
    %1459 = vmatprep.subr.bf16.mxu0 0
    %1460 = vmatpush1.bf16.msra.mxu0 0
    %1461 = vmatprep.subr.bf16.mxu0 0
    %1462 = vmatpush1.bf16.msra.mxu0 0
    %1463 = vmatprep.subr.bf16.mxu0 0
    %1464 = vmatpush1.bf16.msra.mxu0 0
    %1465 = vmatprep.subr.bf16.mxu0 0
    %1466 = vmatpush1.bf16.msra.mxu0 0
    %1467 = vmatprep.subr.bf16.mxu0 0
    %1468 = vmatpush1.bf16.msra.mxu0 0
    %1469 = vmatprep.subr.bf16.mxu0 0
    %1470 = vmatpush1.bf16.msra.mxu0 0
    %1471 = vmatprep.subr.bf16.mxu0 0
    %1472 = vmatpush1.bf16.msra.mxu0 0
    %1473 = vmatprep.mubr.bf16.mxu0 0
    %1474 = vmatmul.mubr.bf16.gmra.mrb[0].mxu0 %v1376
    %v1475 = vpop.f32.mrb[0].mxu0
    %v1476 = vadd.f32 %v1439, %v1475
    %v1477 = vpop.f32.mrb[0].mxu0
    %v1478 = vpop.f32.mrb[0].mxu0
    %v1479 = vpop.f32.mrb[0].mxu0
    %1480 = vdwg.mxu0
    %v1481 = vtanh.pop %v1476
    %v1483 = vcombine.high %v1481, %v1481
    %v1485 = vunpack.c.l.s4 1966171168
    %v1486 = vunpack.c.0.s8 %v1485
    %v1487 = vlaneseq
    %v1488 = vshrl.u32 %v1487, 7
    %v1489 = vsub.s32 %v1486, %v1488
    %v1490 = vrot.slane %v1481, %v1489
    %v1492 = vunpack.c.l.s4 1966171168
    %v1493 = vunpack.c.0.s8 %v1492
    %v1494 = vlaneseq
    %v1495 = vshrl.u32 %v1494, 7
    %v1496 = vsub.s32 %v1493, %v1495
    %v1497 = vrot.slane %v1483, %v1496
    %v1498 = vcombine.high %v1490, %v1490
    %v1499 = vcombine.high %v1497, %v1497
    %v1501 = vunpack.c.l.s4 1966171168
    %v1502 = vunpack.c.0.s8 %v1501
    %v1503 = vlaneseq
    %v1504 = vshrl.u32 %v1503, 7
    %v1505 = vsub.s32 %v1502, %v1504
    %v1506 = vrot.slane %v1490, %v1505
    %v1508 = vunpack.c.l.s4 1966171168
    %v1509 = vunpack.c.0.s8 %v1508
    %v1510 = vlaneseq
    %v1511 = vshrl.u32 %v1510, 7
    %v1512 = vsub.s32 %v1509, %v1511
    %v1513 = vrot.slane %v1497, %v1512
    %v1515 = vunpack.c.l.s4 1966171168
    %v1516 = vunpack.c.0.s8 %v1515
    %v1517 = vlaneseq
    %v1518 = vshrl.u32 %v1517, 7
    %v1519 = vsub.s32 %v1516, %v1518
    %v1520 = vrot.slane %v1498, %v1519
    %v1522 = vunpack.c.l.s4 1966171168
    %v1523 = vunpack.c.0.s8 %v1522
    %v1524 = vlaneseq
    %v1525 = vshrl.u32 %v1524, 7
    %v1526 = vsub.s32 %v1523, %v1525
    %v1527 = vrot.slane %v1499, %v1526
    %v1528 = vcombine.high %v1506, %v1506
    %v1529 = vcombine.high %v1513, %v1513
    %v1530 = vcombine.high %v1520, %v1520
    %v1531 = vcombine.high %v1527, %v1527
    %v1532 = vlaneseq
    %v1533 = vshrl.u32 %v1532, 7
    %v1534 = vsub.s32 0, %v1533
    %v1535 = vrot.slane %v1506, %v1534
    %v1536 = vlaneseq
    %v1537 = vshrl.u32 %v1536, 7
    %v1538 = vsub.s32 0, %v1537
    %v1539 = vrot.slane %v1520, %v1538
    %v1540 = vlaneseq
    %v1541 = vshrl.u32 %v1540, 7
    %v1542 = vsub.s32 0, %v1541
    %v1543 = vrot.slane %v1528, %v1542
    %v1544 = vlaneseq
    %v1545 = vshrl.u32 %v1544, 7
    %v1546 = vsub.s32 0, %v1545
    %v1547 = vrot.slane %v1530, %v1546
    %v1548 = vlaneseq
    %v1549 = vshrl.u32 %v1548, 7
    %v1550 = vsub.s32 0, %v1549
    %v1551 = vrot.slane %v1513, %v1550
    %v1552 = vlaneseq
    %v1553 = vshrl.u32 %v1552, 7
    %v1554 = vsub.s32 0, %v1553
    %v1555 = vrot.slane %v1527, %v1554
    %v1556 = vlaneseq
    %v1557 = vshrl.u32 %v1556, 7
    %v1558 = vsub.s32 0, %v1557
    %v1559 = vrot.slane %v1529, %v1558
    %v1560 = vlaneseq
    %v1561 = vshrl.u32 %v1560, 7
    %v1562 = vsub.s32 0, %v1561
    %v1563 = vrot.slane %v1531, %v1562
    %v1572 = vmul.f32 %v461, %v1535
    %v1573 = vmul.f32 %v464, %v1539
    %v1574 = vmul.f32 %v469, %v1543
    %v1575 = vmul.f32 %v472, %v1547
    %v1576 = vmul.f32 %v477, %v1551
    %v1577 = vmul.f32 %v480, %v1555
    %v1578 = vmul.f32 %v485, %v1559
    %v1579 = vmul.f32 %v488, %v1563
    %1580 = vadd.xlane.f32.xlu0 %v1572
    %v1581 = vpop.xlane.xlu0 %1580
    %1582 = vadd.xlane.f32.xlu0 %v1573
    %v1583 = vpop.xlane.xlu0 %1582
    %1584 = vadd.xlane.f32.xlu0 %v1574
    %v1585 = vpop.xlane.xlu0 %1584
    %1586 = vadd.xlane.f32.xlu0 %v1575
    %v1587 = vpop.xlane.xlu0 %1586
    %1588 = vadd.xlane.f32.xlu0 %v1576
    %v1589 = vpop.xlane.xlu0 %1588
    %1590 = vadd.xlane.f32.xlu0 %v1577
    %v1591 = vpop.xlane.xlu0 %1590
    %1592 = vadd.xlane.f32.xlu0 %v1578
    %v1593 = vpop.xlane.xlu0 %1592
    %1594 = vadd.xlane.f32.xlu0 %v1579
    %v1595 = vpop.xlane.xlu0 %1594
    %v1604 = vlaneseq
    %v1605 = vshrl.u32 %v1604, 7
    %v1606 = vsub.s32 %v32, %v1605
    %v1607 = vrot.slane %v1581, %v1606
    %v1608 = vlaneseq
    %v1609 = vshrl.u32 %v1608, 7
    %v1610 = vsub.s32 %v32, %v1609
    %v1611 = vrot.slane %v1583, %v1610
    %v1612 = vlaneseq
    %v1613 = vshrl.u32 %v1612, 7
    %v1614 = vsub.s32 %v32, %v1613
    %v1615 = vrot.slane %v1585, %v1614
    %v1616 = vlaneseq
    %v1617 = vshrl.u32 %v1616, 7
    %v1618 = vsub.s32 %v32, %v1617
    %v1619 = vrot.slane %v1587, %v1618
    %v1620 = vlaneseq
    %v1621 = vshrl.u32 %v1620, 7
    %v1622 = vsub.s32 %v32, %v1621
    %v1623 = vrot.slane %v1589, %v1622
    %v1624 = vlaneseq
    %v1625 = vshrl.u32 %v1624, 7
    %v1626 = vsub.s32 %v32, %v1625
    %v1627 = vrot.slane %v1591, %v1626
    %v1628 = vlaneseq
    %v1629 = vshrl.u32 %v1628, 7
    %v1630 = vsub.s32 %v32, %v1629
    %v1631 = vrot.slane %v1593, %v1630
    %v1632 = vlaneseq
    %v1633 = vshrl.u32 %v1632, 7
    %v1634 = vsub.s32 %v32, %v1633
    %v1635 = vrot.slane %v1595, %v1634
    %v1636 = vsel %vm1071, %v1611, %v1607
    %v1637 = vsel %vm1073, %v1615, %v1636
    %v1638 = vsel %vm1075, %v1619, %v1637
    %v1639 = vsel %vm1077, %v1623, %v1638
    %v1640 = vsel %vm1079, %v1627, %v1639
    %v1641 = vsel %vm1081, %v1631, %v1640
    %v1642 = vsel %vm1083, %v1635, %v1641
    %v1644 = vsel %vm1086, %v1642, -inf
    %1645 = vmax.xlane.f32.xlu0 %v1644
    %v1646 = vpop.xlane.xlu0 %1645
    %v1648 = vlaneseq
    %v1649 = vshrl.u32 %v1648, 7
    %v1650 = vsub.s32 0, %v1649
    %v1651 = vrot.slane %v1646, %v1650
    %v1652 = vlaneseq
    %v1653 = vshrl.u32 %v1652, 7
    %v1654 = vsub.s32 1, %v1653
    %v1655 = vrot.slane %v1646, %v1654
    %v1656 = vlaneseq
    %v1657 = vshrl.u32 %v1656, 7
    %v1658 = vsub.s32 2, %v1657
    %v1659 = vrot.slane %v1646, %v1658
    %v1660 = vlaneseq
    %v1661 = vshrl.u32 %v1660, 7
    %v1662 = vsub.s32 3, %v1661
    %v1663 = vrot.slane %v1646, %v1662
    %v1664 = vlaneseq
    %v1665 = vshrl.u32 %v1664, 7
    %v1666 = vsub.s32 4, %v1665
    %v1667 = vrot.slane %v1646, %v1666
    %v1668 = vlaneseq
    %v1669 = vshrl.u32 %v1668, 7
    %v1670 = vsub.s32 5, %v1669
    %v1671 = vrot.slane %v1646, %v1670
    %v1672 = vlaneseq
    %v1673 = vshrl.u32 %v1672, 7
    %v1674 = vsub.s32 6, %v1673
    %v1675 = vrot.slane %v1646, %v1674
    %v1676 = vlaneseq
    %v1677 = vshrl.u32 %v1676, 7
    %v1678 = vsub.s32 7, %v1677
    %v1679 = vrot.slane %v1646, %v1678
    %v1688 = vsub.f32 %v1581, %v1651
    %v1689 = vsub.f32 %v1583, %v1655
    %v1690 = vsub.f32 %v1585, %v1659
    %v1691 = vsub.f32 %v1587, %v1663
    %v1692 = vsub.f32 %v1589, %v1667
    %v1693 = vsub.f32 %v1591, %v1671
    %v1694 = vsub.f32 %v1593, %v1675
    %v1695 = vsub.f32 %v1595, %v1679
    %v1696 = vmul.f32 %v1688, 1.442695
    %v1697 = vpow.pop %v1696
    %v1698 = vmul.f32 %v1689, 1.442695
    %v1699 = vpow.pop %v1698
    %v1700 = vmul.f32 %v1690, 1.442695
    %v1701 = vpow.pop %v1700
    %v1702 = vmul.f32 %v1691, 1.442695
    %v1703 = vpow.pop %v1702
    %v1704 = vmul.f32 %v1692, 1.442695
    %v1705 = vpow.pop %v1704
    %v1706 = vmul.f32 %v1693, 1.442695
    %v1707 = vpow.pop %v1706
    %v1708 = vmul.f32 %v1694, 1.442695
    %v1709 = vpow.pop %v1708
    %v1710 = vmul.f32 %v1695, 1.442695
    %v1711 = vpow.pop %v1710
    %1720 = vset.pattern.permute.xlu0 0
    %1721 = vperm.xlu0 %1720, %v1697
    %v1722 = vpop.permute.xlu0 %1721
    %1723 = vset.pattern.permute.xlu0 0
    %1724 = vperm.xlu0 %1723, %v1699
    %v1725 = vpop.permute.xlu0 %1724
    %1726 = vset.pattern.permute.xlu0 0
    %1727 = vperm.xlu0 %1726, %v1701
    %v1728 = vpop.permute.xlu0 %1727
    %1729 = vset.pattern.permute.xlu0 0
    %1730 = vperm.xlu0 %1729, %v1703
    %v1731 = vpop.permute.xlu0 %1730
    %1732 = vset.pattern.permute.xlu0 0
    %1733 = vperm.xlu0 %1732, %v1705
    %v1734 = vpop.permute.xlu0 %1733
    %1735 = vset.pattern.permute.xlu0 0
    %1736 = vperm.xlu0 %1735, %v1707
    %v1737 = vpop.permute.xlu0 %1736
    %1738 = vset.pattern.permute.xlu0 0
    %1739 = vperm.xlu0 %1738, %v1709
    %v1740 = vpop.permute.xlu0 %1739
    %1741 = vset.pattern.permute.xlu0 0
    %1742 = vperm.xlu0 %1741, %v1711
    %v1743 = vpop.permute.xlu0 %1742
    %v1744 = vlaneseq
    %v1745 = vshrl.u32 %v1744, 7
    %v1746 = vsub.s32 %v32, %v1745
    %v1747 = vrot.slane %v1722, %v1746
    %v1748 = vlaneseq
    %v1749 = vshrl.u32 %v1748, 7
    %v1750 = vsub.s32 %v32, %v1749
    %v1751 = vrot.slane %v1725, %v1750
    %v1752 = vlaneseq
    %v1753 = vshrl.u32 %v1752, 7
    %v1754 = vsub.s32 %v32, %v1753
    %v1755 = vrot.slane %v1728, %v1754
    %v1756 = vlaneseq
    %v1757 = vshrl.u32 %v1756, 7
    %v1758 = vsub.s32 %v32, %v1757
    %v1759 = vrot.slane %v1731, %v1758
    %v1760 = vlaneseq
    %v1761 = vshrl.u32 %v1760, 7
    %v1762 = vsub.s32 %v32, %v1761
    %v1763 = vrot.slane %v1734, %v1762
    %v1764 = vlaneseq
    %v1765 = vshrl.u32 %v1764, 7
    %v1766 = vsub.s32 %v32, %v1765
    %v1767 = vrot.slane %v1737, %v1766
    %v1768 = vlaneseq
    %v1769 = vshrl.u32 %v1768, 7
    %v1770 = vsub.s32 %v32, %v1769
    %v1771 = vrot.slane %v1740, %v1770
    %v1772 = vlaneseq
    %v1773 = vshrl.u32 %v1772, 7
    %v1774 = vsub.s32 %v32, %v1773
    %v1775 = vrot.slane %v1743, %v1774
    %v1776 = vsel %vm1071, %v1751, %v1747
    %v1777 = vsel %vm1073, %v1755, %v1776
    %v1778 = vsel %vm1075, %v1759, %v1777
    %v1779 = vsel %vm1077, %v1763, %v1778
    %v1780 = vsel %vm1079, %v1767, %v1779
    %v1781 = vsel %vm1081, %v1771, %v1780
    %v1782 = vsel %vm1083, %v1775, %v1781
    %v1784 = vsel %vm1086, %v1782, 0.0
    %1785 = vadd.xlane.f32.xlu0 %v1784
    %v1786 = vpop.xlane.xlu0 %1785
    %v1787 = vrcp.pop %v1786
    %v1789 = vlaneseq
    %v1790 = vshrl.u32 %v1789, 7
    %v1791 = vsub.s32 0, %v1790
    %v1792 = vrot.slane %v1787, %v1791
    %v1793 = vlaneseq
    %v1794 = vshrl.u32 %v1793, 7
    %v1795 = vsub.s32 1, %v1794
    %v1796 = vrot.slane %v1787, %v1795
    %v1797 = vlaneseq
    %v1798 = vshrl.u32 %v1797, 7
    %v1799 = vsub.s32 2, %v1798
    %v1800 = vrot.slane %v1787, %v1799
    %v1801 = vlaneseq
    %v1802 = vshrl.u32 %v1801, 7
    %v1803 = vsub.s32 3, %v1802
    %v1804 = vrot.slane %v1787, %v1803
    %v1805 = vlaneseq
    %v1806 = vshrl.u32 %v1805, 7
    %v1807 = vsub.s32 4, %v1806
    %v1808 = vrot.slane %v1787, %v1807
    %v1809 = vlaneseq
    %v1810 = vshrl.u32 %v1809, 7
    %v1811 = vsub.s32 5, %v1810
    %v1812 = vrot.slane %v1787, %v1811
    %v1813 = vlaneseq
    %v1814 = vshrl.u32 %v1813, 7
    %v1815 = vsub.s32 6, %v1814
    %v1816 = vrot.slane %v1787, %v1815
    %v1817 = vlaneseq
    %v1818 = vshrl.u32 %v1817, 7
    %v1819 = vsub.s32 7, %v1818
    %v1820 = vrot.slane %v1787, %v1819
    %v1829 = vmul.f32 %v1697, %v1792
    %v1830 = vmul.f32 %v1699, %v1796
    %v1831 = vmul.f32 %v1701, %v1800
    %v1832 = vmul.f32 %v1703, %v1804
    %v1833 = vmul.f32 %v1705, %v1808
    %v1834 = vmul.f32 %v1707, %v1812
    %v1835 = vmul.f32 %v1709, %v1816
    %v1836 = vmul.f32 %v1711, %v1820
    %1838 = vset.pattern.permute.xlu0 0
    %1839 = vperm.xlu0 %1838, %v1829
    %v1840 = vpop.permute.xlu0 %1839
    %1843 = vset.pattern.permute.xlu0 0
    %1844 = vperm.xlu0 %1843, %v1830
    %v1845 = vpop.permute.xlu0 %1844
    %1848 = vset.pattern.permute.xlu0 0
    %1849 = vperm.xlu0 %1848, %v1831
    %v1850 = vpop.permute.xlu0 %1849
    %1853 = vset.pattern.permute.xlu0 0
    %1854 = vperm.xlu0 %1853, %v1832
    %v1855 = vpop.permute.xlu0 %1854
    %1858 = vset.pattern.permute.xlu0 0
    %1859 = vperm.xlu0 %1858, %v1833
    %v1860 = vpop.permute.xlu0 %1859
    %1863 = vset.pattern.permute.xlu0 0
    %1864 = vperm.xlu0 %1863, %v1834
    %v1865 = vpop.permute.xlu0 %1864
    %1868 = vset.pattern.permute.xlu0 0
    %1869 = vperm.xlu0 %1868, %v1835
    %v1870 = vpop.permute.xlu0 %1869
    %1873 = vset.pattern.permute.xlu0 0
    %1874 = vperm.xlu0 %1873, %v1836
    %v1875 = vpop.permute.xlu0 %1874
    %v1877 = vmul.f32 %v1840, %v461
    %v1878 = vmul.f32 %v1845, %v464
    %v1879 = vmul.f32 %v1850, %v469
    %v1880 = vmul.f32 %v1855, %v472
    %v1881 = vmul.f32 %v1860, %v477
    %v1882 = vmul.f32 %v1865, %v480
    %v1883 = vmul.f32 %v1870, %v485
    %v1884 = vmul.f32 %v1875, %v488
    %v1885 = vrot.slane %v1877, 4
    %v1886 = vadd.f32 %v1877, %v1885
    %v1887 = vrot.slane %v1886, 2
    %v1888 = vadd.f32 %v1886, %v1887
    %v1889 = vrot.slane %v1888, 1
    %v1890 = vadd.f32 %v1888, %v1889
    %v1891 = vrot.slane %v1878, 4
    %v1892 = vadd.f32 %v1878, %v1891
    %v1893 = vrot.slane %v1892, 2
    %v1894 = vadd.f32 %v1892, %v1893
    %v1895 = vrot.slane %v1894, 1
    %v1896 = vadd.f32 %v1894, %v1895
    %v1897 = vrot.slane %v1879, 4
    %v1898 = vadd.f32 %v1879, %v1897
    %v1899 = vrot.slane %v1898, 2
    %v1900 = vadd.f32 %v1898, %v1899
    %v1901 = vrot.slane %v1900, 1
    %v1902 = vadd.f32 %v1900, %v1901
    %v1903 = vrot.slane %v1880, 4
    %v1904 = vadd.f32 %v1880, %v1903
    %v1905 = vrot.slane %v1904, 2
    %v1906 = vadd.f32 %v1904, %v1905
    %v1907 = vrot.slane %v1906, 1
    %v1908 = vadd.f32 %v1906, %v1907
    %v1909 = vrot.slane %v1881, 4
    %v1910 = vadd.f32 %v1881, %v1909
    %v1911 = vrot.slane %v1910, 2
    %v1912 = vadd.f32 %v1910, %v1911
    %v1913 = vrot.slane %v1912, 1
    %v1914 = vadd.f32 %v1912, %v1913
    %v1915 = vrot.slane %v1882, 4
    %v1916 = vadd.f32 %v1882, %v1915
    %v1917 = vrot.slane %v1916, 2
    %v1918 = vadd.f32 %v1916, %v1917
    %v1919 = vrot.slane %v1918, 1
    %v1920 = vadd.f32 %v1918, %v1919
    %v1921 = vrot.slane %v1883, 4
    %v1922 = vadd.f32 %v1883, %v1921
    %v1923 = vrot.slane %v1922, 2
    %v1924 = vadd.f32 %v1922, %v1923
    %v1925 = vrot.slane %v1924, 1
    %v1926 = vadd.f32 %v1924, %v1925
    %v1927 = vrot.slane %v1884, 4
    %v1928 = vadd.f32 %v1884, %v1927
    %v1929 = vrot.slane %v1928, 2
    %v1930 = vadd.f32 %v1928, %v1929
    %v1931 = vrot.slane %v1930, 1
    %v1932 = vadd.f32 %v1930, %v1931
    %v1933 = vpack.c.bf16 %v1481, %v1481
    %v1942 = vsel %vm1071, %v1896, %v1890
    %v1943 = vsel %vm1073, %v1902, %v1942
    %v1944 = vsel %vm1075, %v1908, %v1943
    %v1945 = vsel %vm1077, %v1914, %v1944
    %v1946 = vsel %vm1079, %v1920, %v1945
    %v1947 = vsel %vm1081, %v1926, %v1946
    %v1948 = vsel %vm1083, %v1932, %v1947
    %1950 = vmatprep.subr.bf16.mxu0 0
    %1951 = vmatpush1.bf16.msra.mxu0 %v1409
    %1952 = vmatprep.subr.bf16.mxu0 0
    %1953 = vmatpush1.bf16.msra.mxu0 %v1410
    %1954 = vmatprep.subr.bf16.mxu0 0
    %1955 = vmatpush1.bf16.msra.mxu0 %v1411
    %1956 = vmatprep.subr.bf16.mxu0 0
    %1957 = vmatpush1.bf16.msra.mxu0 %v1412
    %1958 = vmatprep.subr.bf16.mxu0 0
    %1959 = vmatpush1.bf16.msra.mxu0 %v1413
    %1960 = vmatprep.subr.bf16.mxu0 0
    %1961 = vmatpush1.bf16.msra.mxu0 %v1414
    %1962 = vmatprep.subr.bf16.mxu0 0
    %1963 = vmatpush1.bf16.msra.mxu0 %v1415
    %1964 = vmatprep.subr.bf16.mxu0 0
    %1965 = vmatpush1.bf16.msra.mxu0 %v1416
    %1966 = vmatprep.subr.bf16.mxu0 0
    %1967 = vmatpush1.bf16.msra.mxu0 0
    %1968 = vmatprep.subr.bf16.mxu0 0
    %1969 = vmatpush1.bf16.msra.mxu0 0
    %1970 = vmatprep.subr.bf16.mxu0 0
    %1971 = vmatpush1.bf16.msra.mxu0 0
    %1972 = vmatprep.subr.bf16.mxu0 0
    %1973 = vmatpush1.bf16.msra.mxu0 0
    %1974 = vmatprep.subr.bf16.mxu0 0
    %1975 = vmatpush1.bf16.msra.mxu0 0
    %1976 = vmatprep.subr.bf16.mxu0 0
    %1977 = vmatpush1.bf16.msra.mxu0 0
    %1978 = vmatprep.subr.bf16.mxu0 0
    %1979 = vmatpush1.bf16.msra.mxu0 0
    %1980 = vmatprep.subr.bf16.mxu0 0
    %1981 = vmatpush1.bf16.msra.mxu0 0
    %1982 = vmatprep.mubr.bf16.mxu0 0
    %1983 = vmatmul.mubr.bf16.gmra.mrb[0].mxu0 %v1933
    %v1984 = vpop.f32.mrb[0].mxu0
    %v1985 = vadd.f32 %v1948, %v1984
    %v1986 = vpop.f32.mrb[0].mxu0
    %v1987 = vpop.f32.mrb[0].mxu0
    %v1988 = vpop.f32.mrb[0].mxu0
    %1989 = vdwg.mxu0
    %v1990 = vtanh.pop %v1985
    %v1992 = vcombine.high %v1990, %v1990
    %v1994 = vunpack.c.l.s4 1966171168
    %v1995 = vunpack.c.0.s8 %v1994
    %v1996 = vlaneseq
    %v1997 = vshrl.u32 %v1996, 7
    %v1998 = vsub.s32 %v1995, %v1997
    %v1999 = vrot.slane %v1990, %v1998
    %v2001 = vunpack.c.l.s4 1966171168
    %v2002 = vunpack.c.0.s8 %v2001
    %v2003 = vlaneseq
    %v2004 = vshrl.u32 %v2003, 7
    %v2005 = vsub.s32 %v2002, %v2004
    %v2006 = vrot.slane %v1992, %v2005
    %v2007 = vcombine.high %v1999, %v1999
    %v2008 = vcombine.high %v2006, %v2006
    %v2010 = vunpack.c.l.s4 1966171168
    %v2011 = vunpack.c.0.s8 %v2010
    %v2012 = vlaneseq
    %v2013 = vshrl.u32 %v2012, 7
    %v2014 = vsub.s32 %v2011, %v2013
    %v2015 = vrot.slane %v1999, %v2014
    %v2017 = vunpack.c.l.s4 1966171168
    %v2018 = vunpack.c.0.s8 %v2017
    %v2019 = vlaneseq
    %v2020 = vshrl.u32 %v2019, 7
    %v2021 = vsub.s32 %v2018, %v2020
    %v2022 = vrot.slane %v2006, %v2021
    %v2024 = vunpack.c.l.s4 1966171168
    %v2025 = vunpack.c.0.s8 %v2024
    %v2026 = vlaneseq
    %v2027 = vshrl.u32 %v2026, 7
    %v2028 = vsub.s32 %v2025, %v2027
    %v2029 = vrot.slane %v2007, %v2028
    %v2031 = vunpack.c.l.s4 1966171168
    %v2032 = vunpack.c.0.s8 %v2031
    %v2033 = vlaneseq
    %v2034 = vshrl.u32 %v2033, 7
    %v2035 = vsub.s32 %v2032, %v2034
    %v2036 = vrot.slane %v2008, %v2035
    %v2037 = vcombine.high %v2015, %v2015
    %v2038 = vcombine.high %v2022, %v2022
    %v2039 = vcombine.high %v2029, %v2029
    %v2040 = vcombine.high %v2036, %v2036
    %v2041 = vlaneseq
    %v2042 = vshrl.u32 %v2041, 7
    %v2043 = vsub.s32 0, %v2042
    %v2044 = vrot.slane %v2015, %v2043
    %v2045 = vlaneseq
    %v2046 = vshrl.u32 %v2045, 7
    %v2047 = vsub.s32 0, %v2046
    %v2048 = vrot.slane %v2029, %v2047
    %v2049 = vlaneseq
    %v2050 = vshrl.u32 %v2049, 7
    %v2051 = vsub.s32 0, %v2050
    %v2052 = vrot.slane %v2037, %v2051
    %v2053 = vlaneseq
    %v2054 = vshrl.u32 %v2053, 7
    %v2055 = vsub.s32 0, %v2054
    %v2056 = vrot.slane %v2039, %v2055
    %v2057 = vlaneseq
    %v2058 = vshrl.u32 %v2057, 7
    %v2059 = vsub.s32 0, %v2058
    %v2060 = vrot.slane %v2022, %v2059
    %v2061 = vlaneseq
    %v2062 = vshrl.u32 %v2061, 7
    %v2063 = vsub.s32 0, %v2062
    %v2064 = vrot.slane %v2036, %v2063
    %v2065 = vlaneseq
    %v2066 = vshrl.u32 %v2065, 7
    %v2067 = vsub.s32 0, %v2066
    %v2068 = vrot.slane %v2038, %v2067
    %v2069 = vlaneseq
    %v2070 = vshrl.u32 %v2069, 7
    %v2071 = vsub.s32 0, %v2070
    %v2072 = vrot.slane %v2040, %v2071
    %v2081 = vmul.f32 %v461, %v2044
    %v2082 = vmul.f32 %v464, %v2048
    %v2083 = vmul.f32 %v469, %v2052
    %v2084 = vmul.f32 %v472, %v2056
    %v2085 = vmul.f32 %v477, %v2060
    %v2086 = vmul.f32 %v480, %v2064
    %v2087 = vmul.f32 %v485, %v2068
    %v2088 = vmul.f32 %v488, %v2072
    %2089 = vadd.xlane.f32.xlu0 %v2081
    %v2090 = vpop.xlane.xlu0 %2089
    %2091 = vadd.xlane.f32.xlu0 %v2082
    %v2092 = vpop.xlane.xlu0 %2091
    %2093 = vadd.xlane.f32.xlu0 %v2083
    %v2094 = vpop.xlane.xlu0 %2093
    %2095 = vadd.xlane.f32.xlu0 %v2084
    %v2096 = vpop.xlane.xlu0 %2095
    %2097 = vadd.xlane.f32.xlu0 %v2085
    %v2098 = vpop.xlane.xlu0 %2097
    %2099 = vadd.xlane.f32.xlu0 %v2086
    %v2100 = vpop.xlane.xlu0 %2099
    %2101 = vadd.xlane.f32.xlu0 %v2087
    %v2102 = vpop.xlane.xlu0 %2101
    %2103 = vadd.xlane.f32.xlu0 %v2088
    %v2104 = vpop.xlane.xlu0 %2103
    %v2113 = vlaneseq
    %v2114 = vshrl.u32 %v2113, 7
    %v2115 = vsub.s32 %v32, %v2114
    %v2116 = vrot.slane %v2090, %v2115
    %v2117 = vlaneseq
    %v2118 = vshrl.u32 %v2117, 7
    %v2119 = vsub.s32 %v32, %v2118
    %v2120 = vrot.slane %v2092, %v2119
    %v2121 = vlaneseq
    %v2122 = vshrl.u32 %v2121, 7
    %v2123 = vsub.s32 %v32, %v2122
    %v2124 = vrot.slane %v2094, %v2123
    %v2125 = vlaneseq
    %v2126 = vshrl.u32 %v2125, 7
    %v2127 = vsub.s32 %v32, %v2126
    %v2128 = vrot.slane %v2096, %v2127
    %v2129 = vlaneseq
    %v2130 = vshrl.u32 %v2129, 7
    %v2131 = vsub.s32 %v32, %v2130
    %v2132 = vrot.slane %v2098, %v2131
    %v2133 = vlaneseq
    %v2134 = vshrl.u32 %v2133, 7
    %v2135 = vsub.s32 %v32, %v2134
    %v2136 = vrot.slane %v2100, %v2135
    %v2137 = vlaneseq
    %v2138 = vshrl.u32 %v2137, 7
    %v2139 = vsub.s32 %v32, %v2138
    %v2140 = vrot.slane %v2102, %v2139
    %v2141 = vlaneseq
    %v2142 = vshrl.u32 %v2141, 7
    %v2143 = vsub.s32 %v32, %v2142
    %v2144 = vrot.slane %v2104, %v2143
    %v2145 = vsel %vm1071, %v2120, %v2116
    %v2146 = vsel %vm1073, %v2124, %v2145
    %v2147 = vsel %vm1075, %v2128, %v2146
    %v2148 = vsel %vm1077, %v2132, %v2147
    %v2149 = vsel %vm1079, %v2136, %v2148
    %v2150 = vsel %vm1081, %v2140, %v2149
    %v2151 = vsel %vm1083, %v2144, %v2150
    %v2153 = vsel %vm1086, %v2151, -inf
    %2154 = vmax.xlane.f32.xlu0 %v2153
    %v2155 = vpop.xlane.xlu0 %2154
    %v2157 = vlaneseq
    %v2158 = vshrl.u32 %v2157, 7
    %v2159 = vsub.s32 0, %v2158
    %v2160 = vrot.slane %v2155, %v2159
    %v2161 = vlaneseq
    %v2162 = vshrl.u32 %v2161, 7
    %v2163 = vsub.s32 1, %v2162
    %v2164 = vrot.slane %v2155, %v2163
    %v2165 = vlaneseq
    %v2166 = vshrl.u32 %v2165, 7
    %v2167 = vsub.s32 2, %v2166
    %v2168 = vrot.slane %v2155, %v2167
    %v2169 = vlaneseq
    %v2170 = vshrl.u32 %v2169, 7
    %v2171 = vsub.s32 3, %v2170
    %v2172 = vrot.slane %v2155, %v2171
    %v2173 = vlaneseq
    %v2174 = vshrl.u32 %v2173, 7
    %v2175 = vsub.s32 4, %v2174
    %v2176 = vrot.slane %v2155, %v2175
    %v2177 = vlaneseq
    %v2178 = vshrl.u32 %v2177, 7
    %v2179 = vsub.s32 5, %v2178
    %v2180 = vrot.slane %v2155, %v2179
    %v2181 = vlaneseq
    %v2182 = vshrl.u32 %v2181, 7
    %v2183 = vsub.s32 6, %v2182
    %v2184 = vrot.slane %v2155, %v2183
    %v2185 = vlaneseq
    %v2186 = vshrl.u32 %v2185, 7
    %v2187 = vsub.s32 7, %v2186
    %v2188 = vrot.slane %v2155, %v2187
    %v2197 = vsub.f32 %v2090, %v2160
    %v2198 = vsub.f32 %v2092, %v2164
    %v2199 = vsub.f32 %v2094, %v2168
    %v2200 = vsub.f32 %v2096, %v2172
    %v2201 = vsub.f32 %v2098, %v2176
    %v2202 = vsub.f32 %v2100, %v2180
    %v2203 = vsub.f32 %v2102, %v2184
    %v2204 = vsub.f32 %v2104, %v2188
    %v2205 = vmul.f32 %v2197, 1.442695
    %v2206 = vpow.pop %v2205
    %v2207 = vmul.f32 %v2198, 1.442695
    %v2208 = vpow.pop %v2207
    %v2209 = vmul.f32 %v2199, 1.442695
    %v2210 = vpow.pop %v2209
    %v2211 = vmul.f32 %v2200, 1.442695
    %v2212 = vpow.pop %v2211
    %v2213 = vmul.f32 %v2201, 1.442695
    %v2214 = vpow.pop %v2213
    %v2215 = vmul.f32 %v2202, 1.442695
    %v2216 = vpow.pop %v2215
    %v2217 = vmul.f32 %v2203, 1.442695
    %v2218 = vpow.pop %v2217
    %v2219 = vmul.f32 %v2204, 1.442695
    %v2220 = vpow.pop %v2219
    %2229 = vset.pattern.permute.xlu0 0
    %2230 = vperm.xlu0 %2229, %v2206
    %v2231 = vpop.permute.xlu0 %2230
    %2232 = vset.pattern.permute.xlu0 0
    %2233 = vperm.xlu0 %2232, %v2208
    %v2234 = vpop.permute.xlu0 %2233
    %2235 = vset.pattern.permute.xlu0 0
    %2236 = vperm.xlu0 %2235, %v2210
    %v2237 = vpop.permute.xlu0 %2236
    %2238 = vset.pattern.permute.xlu0 0
    %2239 = vperm.xlu0 %2238, %v2212
    %v2240 = vpop.permute.xlu0 %2239
    %2241 = vset.pattern.permute.xlu0 0
    %2242 = vperm.xlu0 %2241, %v2214
    %v2243 = vpop.permute.xlu0 %2242
    %2244 = vset.pattern.permute.xlu0 0
    %2245 = vperm.xlu0 %2244, %v2216
    %v2246 = vpop.permute.xlu0 %2245
    %2247 = vset.pattern.permute.xlu0 0
    %2248 = vperm.xlu0 %2247, %v2218
    %v2249 = vpop.permute.xlu0 %2248
    %2250 = vset.pattern.permute.xlu0 0
    %2251 = vperm.xlu0 %2250, %v2220
    %v2252 = vpop.permute.xlu0 %2251
    %v2253 = vlaneseq
    %v2254 = vshrl.u32 %v2253, 7
    %v2255 = vsub.s32 %v32, %v2254
    %v2256 = vrot.slane %v2231, %v2255
    %v2257 = vlaneseq
    %v2258 = vshrl.u32 %v2257, 7
    %v2259 = vsub.s32 %v32, %v2258
    %v2260 = vrot.slane %v2234, %v2259
    %v2261 = vlaneseq
    %v2262 = vshrl.u32 %v2261, 7
    %v2263 = vsub.s32 %v32, %v2262
    %v2264 = vrot.slane %v2237, %v2263
    %v2265 = vlaneseq
    %v2266 = vshrl.u32 %v2265, 7
    %v2267 = vsub.s32 %v32, %v2266
    %v2268 = vrot.slane %v2240, %v2267
    %v2269 = vlaneseq
    %v2270 = vshrl.u32 %v2269, 7
    %v2271 = vsub.s32 %v32, %v2270
    %v2272 = vrot.slane %v2243, %v2271
    %v2273 = vlaneseq
    %v2274 = vshrl.u32 %v2273, 7
    %v2275 = vsub.s32 %v32, %v2274
    %v2276 = vrot.slane %v2246, %v2275
    %v2277 = vlaneseq
    %v2278 = vshrl.u32 %v2277, 7
    %v2279 = vsub.s32 %v32, %v2278
    %v2280 = vrot.slane %v2249, %v2279
    %v2281 = vlaneseq
    %v2282 = vshrl.u32 %v2281, 7
    %v2283 = vsub.s32 %v32, %v2282
    %v2284 = vrot.slane %v2252, %v2283
    %v2285 = vsel %vm1071, %v2260, %v2256
    %v2286 = vsel %vm1073, %v2264, %v2285
    %v2287 = vsel %vm1075, %v2268, %v2286
    %v2288 = vsel %vm1077, %v2272, %v2287
    %v2289 = vsel %vm1079, %v2276, %v2288
    %v2290 = vsel %vm1081, %v2280, %v2289
    %v2291 = vsel %vm1083, %v2284, %v2290
    %v2293 = vsel %vm1086, %v2291, 0.0
    %2294 = vadd.xlane.f32.xlu0 %v2293
    %v2295 = vpop.xlane.xlu0 %2294
    %v2296 = vrcp.pop %v2295
    %v2298 = vlaneseq
    %v2299 = vshrl.u32 %v2298, 7
    %v2300 = vsub.s32 0, %v2299
    %v2301 = vrot.slane %v2296, %v2300
    %v2302 = vlaneseq
    %v2303 = vshrl.u32 %v2302, 7
    %v2304 = vsub.s32 1, %v2303
    %v2305 = vrot.slane %v2296, %v2304
    %v2306 = vlaneseq
    %v2307 = vshrl.u32 %v2306, 7
    %v2308 = vsub.s32 2, %v2307
    %v2309 = vrot.slane %v2296, %v2308
    %v2310 = vlaneseq
    %v2311 = vshrl.u32 %v2310, 7
    %v2312 = vsub.s32 3, %v2311
    %v2313 = vrot.slane %v2296, %v2312
    %v2314 = vlaneseq
    %v2315 = vshrl.u32 %v2314, 7
    %v2316 = vsub.s32 4, %v2315
    %v2317 = vrot.slane %v2296, %v2316
    %v2318 = vlaneseq
    %v2319 = vshrl.u32 %v2318, 7
    %v2320 = vsub.s32 5, %v2319
    %v2321 = vrot.slane %v2296, %v2320
    %v2322 = vlaneseq
    %v2323 = vshrl.u32 %v2322, 7
    %v2324 = vsub.s32 6, %v2323
    %v2325 = vrot.slane %v2296, %v2324
    %v2326 = vlaneseq
    %v2327 = vshrl.u32 %v2326, 7
    %v2328 = vsub.s32 7, %v2327
    %v2329 = vrot.slane %v2296, %v2328
    %v2338 = vmul.f32 %v2206, %v2301
    %v2339 = vmul.f32 %v2208, %v2305
    %v2340 = vmul.f32 %v2210, %v2309
    %v2341 = vmul.f32 %v2212, %v2313
    %v2342 = vmul.f32 %v2214, %v2317
    %v2343 = vmul.f32 %v2216, %v2321
    %v2344 = vmul.f32 %v2218, %v2325
    %v2345 = vmul.f32 %v2220, %v2329
    %2347 = vset.pattern.permute.xlu0 0
    %2348 = vperm.xlu0 %2347, %v2338
    %v2349 = vpop.permute.xlu0 %2348
    %2352 = vset.pattern.permute.xlu0 0
    %2353 = vperm.xlu0 %2352, %v2339
    %v2354 = vpop.permute.xlu0 %2353
    %2357 = vset.pattern.permute.xlu0 0
    %2358 = vperm.xlu0 %2357, %v2340
    %v2359 = vpop.permute.xlu0 %2358
    %2362 = vset.pattern.permute.xlu0 0
    %2363 = vperm.xlu0 %2362, %v2341
    %v2364 = vpop.permute.xlu0 %2363
    %2367 = vset.pattern.permute.xlu0 0
    %2368 = vperm.xlu0 %2367, %v2342
    %v2369 = vpop.permute.xlu0 %2368
    %2372 = vset.pattern.permute.xlu0 0
    %2373 = vperm.xlu0 %2372, %v2343
    %v2374 = vpop.permute.xlu0 %2373
    %2377 = vset.pattern.permute.xlu0 0
    %2378 = vperm.xlu0 %2377, %v2344
    %v2379 = vpop.permute.xlu0 %2378
    %2382 = vset.pattern.permute.xlu0 0
    %2383 = vperm.xlu0 %2382, %v2345
    %v2384 = vpop.permute.xlu0 %2383
    %v2386 = vmul.f32 %v2349, %v461
    %v2387 = vmul.f32 %v2354, %v464
    %v2388 = vmul.f32 %v2359, %v469
    %v2389 = vmul.f32 %v2364, %v472
    %v2390 = vmul.f32 %v2369, %v477
    %v2391 = vmul.f32 %v2374, %v480
    %v2392 = vmul.f32 %v2379, %v485
    %v2393 = vmul.f32 %v2384, %v488
    %v2394 = vrot.slane %v2386, 4
    %v2395 = vadd.f32 %v2386, %v2394
    %v2396 = vrot.slane %v2395, 2
    %v2397 = vadd.f32 %v2395, %v2396
    %v2398 = vrot.slane %v2397, 1
    %v2399 = vadd.f32 %v2397, %v2398
    %v2400 = vrot.slane %v2387, 4
    %v2401 = vadd.f32 %v2387, %v2400
    %v2402 = vrot.slane %v2401, 2
    %v2403 = vadd.f32 %v2401, %v2402
    %v2404 = vrot.slane %v2403, 1
    %v2405 = vadd.f32 %v2403, %v2404
    %v2406 = vrot.slane %v2388, 4
    %v2407 = vadd.f32 %v2388, %v2406
    %v2408 = vrot.slane %v2407, 2
    %v2409 = vadd.f32 %v2407, %v2408
    %v2410 = vrot.slane %v2409, 1
    %v2411 = vadd.f32 %v2409, %v2410
    %v2412 = vrot.slane %v2389, 4
    %v2413 = vadd.f32 %v2389, %v2412
    %v2414 = vrot.slane %v2413, 2
    %v2415 = vadd.f32 %v2413, %v2414
    %v2416 = vrot.slane %v2415, 1
    %v2417 = vadd.f32 %v2415, %v2416
    %v2418 = vrot.slane %v2390, 4
    %v2419 = vadd.f32 %v2390, %v2418
    %v2420 = vrot.slane %v2419, 2
    %v2421 = vadd.f32 %v2419, %v2420
    %v2422 = vrot.slane %v2421, 1
    %v2423 = vadd.f32 %v2421, %v2422
    %v2424 = vrot.slane %v2391, 4
    %v2425 = vadd.f32 %v2391, %v2424
    %v2426 = vrot.slane %v2425, 2
    %v2427 = vadd.f32 %v2425, %v2426
    %v2428 = vrot.slane %v2427, 1
    %v2429 = vadd.f32 %v2427, %v2428
    %v2430 = vrot.slane %v2392, 4
    %v2431 = vadd.f32 %v2392, %v2430
    %v2432 = vrot.slane %v2431, 2
    %v2433 = vadd.f32 %v2431, %v2432
    %v2434 = vrot.slane %v2433, 1
    %v2435 = vadd.f32 %v2433, %v2434
    %v2436 = vrot.slane %v2393, 4
    %v2437 = vadd.f32 %v2393, %v2436
    %v2438 = vrot.slane %v2437, 2
    %v2439 = vadd.f32 %v2437, %v2438
    %v2440 = vrot.slane %v2439, 1
    %v2441 = vadd.f32 %v2439, %v2440
    %v2442 = vpack.c.bf16 %v1990, %v1990
    %v2451 = vsel %vm1071, %v2405, %v2399
    %v2452 = vsel %vm1073, %v2411, %v2451
    %v2453 = vsel %vm1075, %v2417, %v2452
    %v2454 = vsel %vm1077, %v2423, %v2453
    %v2455 = vsel %vm1079, %v2429, %v2454
    %v2456 = vsel %vm1081, %v2435, %v2455
    %v2457 = vsel %vm1083, %v2441, %v2456
    %2459 = vmatprep.subr.bf16.mxu0 0
    %2460 = vmatpush1.bf16.msra.mxu0 %v1409
    %2461 = vmatprep.subr.bf16.mxu0 0
    %2462 = vmatpush1.bf16.msra.mxu0 %v1410
    %2463 = vmatprep.subr.bf16.mxu0 0
    %2464 = vmatpush1.bf16.msra.mxu0 %v1411
    %2465 = vmatprep.subr.bf16.mxu0 0
    %2466 = vmatpush1.bf16.msra.mxu0 %v1412
    %2467 = vmatprep.subr.bf16.mxu0 0
    %2468 = vmatpush1.bf16.msra.mxu0 %v1413
    %2469 = vmatprep.subr.bf16.mxu0 0
    %2470 = vmatpush1.bf16.msra.mxu0 %v1414
    %2471 = vmatprep.subr.bf16.mxu0 0
    %2472 = vmatpush1.bf16.msra.mxu0 %v1415
    %2473 = vmatprep.subr.bf16.mxu0 0
    %2474 = vmatpush1.bf16.msra.mxu0 %v1416
    %2475 = vmatprep.subr.bf16.mxu0 0
    %2476 = vmatpush1.bf16.msra.mxu0 0
    %2477 = vmatprep.subr.bf16.mxu0 0
    %2478 = vmatpush1.bf16.msra.mxu0 0
    %2479 = vmatprep.subr.bf16.mxu0 0
    %2480 = vmatpush1.bf16.msra.mxu0 0
    %2481 = vmatprep.subr.bf16.mxu0 0
    %2482 = vmatpush1.bf16.msra.mxu0 0
    %2483 = vmatprep.subr.bf16.mxu0 0
    %2484 = vmatpush1.bf16.msra.mxu0 0
    %2485 = vmatprep.subr.bf16.mxu0 0
    %2486 = vmatpush1.bf16.msra.mxu0 0
    %2487 = vmatprep.subr.bf16.mxu0 0
    %2488 = vmatpush1.bf16.msra.mxu0 0
    %2489 = vmatprep.subr.bf16.mxu0 0
    %2490 = vmatpush1.bf16.msra.mxu0 0
    %2491 = vmatprep.mubr.bf16.mxu0 0
    %2492 = vmatmul.mubr.bf16.gmra.mrb[0].mxu0 %v2442
    %v2493 = vpop.f32.mrb[0].mxu0
    %v2494 = vadd.f32 %v2457, %v2493
    %v2495 = vpop.f32.mrb[0].mxu0
    %v2496 = vpop.f32.mrb[0].mxu0
    %v2497 = vpop.f32.mrb[0].mxu0
    %2498 = vdwg.mxu0
    %v2499 = vtanh.pop %v2494
    %v2500 = vpack.c.bf16 %v2499, %v2499
    %2501 = vmatprep.subr.bf16.mxu0 0
    %2502 = vmatpush1.bf16.msra.mxu0 %v893
    %2503 = vmatprep.subr.bf16.mxu0 0
    %2504 = vmatpush1.bf16.msra.mxu0 %v894
    %2505 = vmatprep.subr.bf16.mxu0 0
    %2506 = vmatpush1.bf16.msra.mxu0 %v895
    %2507 = vmatprep.subr.bf16.mxu0 0
    %2508 = vmatpush1.bf16.msra.mxu0 %v896
    %2509 = vmatprep.subr.bf16.mxu0 0
    %2510 = vmatpush1.bf16.msra.mxu0 %v897
    %2511 = vmatprep.subr.bf16.mxu0 0
    %2512 = vmatpush1.bf16.msra.mxu0 %v898
    %2513 = vmatprep.subr.bf16.mxu0 0
    %2514 = vmatpush1.bf16.msra.mxu0 %v899
    %2515 = vmatprep.subr.bf16.mxu0 0
    %2516 = vmatpush1.bf16.msra.mxu0 %v900
    %2517 = vmatprep.subr.bf16.mxu0 0
    %2518 = vmatpush1.bf16.msra.mxu0 0
    %2519 = vmatprep.subr.bf16.mxu0 0
    %2520 = vmatpush1.bf16.msra.mxu0 0
    %2521 = vmatprep.subr.bf16.mxu0 0
    %2522 = vmatpush1.bf16.msra.mxu0 0
    %2523 = vmatprep.subr.bf16.mxu0 0
    %2524 = vmatpush1.bf16.msra.mxu0 0
    %2525 = vmatprep.subr.bf16.mxu0 0
    %2526 = vmatpush1.bf16.msra.mxu0 0
    %2527 = vmatprep.subr.bf16.mxu0 0
    %2528 = vmatpush1.bf16.msra.mxu0 0
    %2529 = vmatprep.subr.bf16.mxu0 0
    %2530 = vmatpush1.bf16.msra.mxu0 0
    %2531 = vmatprep.subr.bf16.mxu0 0
    %2532 = vmatpush1.bf16.msra.mxu0 0
    %2533 = vmatprep.mubr.bf16.mxu0 0
    %2534 = vmatmul.mubr.bf16.gmra.mrb[0].mxu0 %v2500
    %v2535 = vpop.f32.mrb[0].mxu0
    %v2536 = vadd.f32 0.0, %v2535
    %v2537 = vpop.f32.mrb[0].mxu0
    %v2538 = vpop.f32.mrb[0].mxu0
    %v2539 = vpop.f32.mrb[0].mxu0
    %2540 = vdwg.mxu0
    %2541 = vst [vmem:[#allocation2] sm:$0xff] %v2536
    // Predicated region
    $region22: #{memn2n_forward.1} parent=1 // pred_check
      _
    $region23: #{memn2n_forward.1} parent=1 // pred_check_branch
      %2543 = sbr.rel (0) target = $region25
    $region24: #{memn2n_forward.1} parent=1 // pred_region
      %s2545 = ssub.s32 128, 128
      %2546 = vsyncadd [#allocation3], %s2545
      %s2548 = sshll.u32 [#allocation2], 4
      %s2549 = int_to_ptr.vmem [resolvable:$true] %s2548
      %2551 = dma.vmem_to_hbm [thread:$0]  %s2549, 128, %s5, [#allocation3]
    $region25: #{memn2n_forward.1} parent=1 // pred_fallthru
      _
    // Predicated region
    $region26: #{memn2n_forward.1} parent=1 // pred_check
      _
    $region27: #{memn2n_forward.1} parent=1 // pred_check_branch
      %2553 = sbr.rel (0) target = $region29
    $region28: #{memn2n_forward.1} parent=1 // pred_region
      %2554 = dma.done [#allocation3], 128
    $region29: #{memn2n_forward.1} parent=1 // pred_fallthru
      _
    %2555 = vsyncpa [#allocation3], 1

</llo_original>
